<compile_context>
chip_gen: v5e
topology: v5e:2x2
jax: 0.10.0
libtpu: 0.0.40
codegen_flags: <defaults>
</compile_context>

<pallas_src>
import functools

import jax
import jax.numpy as jnp
from jax import lax
from jax.experimental import pallas as pl
from jax.experimental.pallas import tpu as pltpu


def attention_block_kernel(x_ref, wc_ref, w1_ref, w2_ref, ws_ref, b_ref,
                           o_ref, xcat_ref, *, batch, cin_pad, cout, cred,
                           h, w, wp, lout, hw, front,
                           off_b1, off_b2, off_bs):
    """Single grid step; channel-major lane-dense layout, all batches at once.

    x_ref   : (B, Cin_pad, Lext)       bf16, zero-padded NCHW flattened to
                                       (H+2)*(W+2), channel-padded to Cin_pad,
                                       with a `front` lane margin for the 9 taps
    wc_ref  : (Cout, 9*Cin_pad)        bf16, column block k = 3x3 tap k (transposed)
    w1_ref  : (Cred, Cout)             f32  cSE fc1 (column-vector form)
    w2_ref  : (Cout, Cred)             f32  cSE fc2
    ws_ref  : (Cout, 1)                f32  sSE 1x1 conv weight (column)
    b_ref   : (32, 1)                  f32  packed biases [bc | b1 | b2 | bs]
    o_ref   : (B, Cout, Lout)          f32  output (garbage lanes cropped on host)
    xcat_ref: (9*Cin_pad, B*Lout)      bf16 scratch: stacked shifted taps
    """
    # ---- stage the 9 shifted taps of every batch into the tile-aligned scratch
    for bi in range(batch):
        xv = x_ref[bi]                                            # (Cin_pad, Lext)
        for k in range(9):
            ky, kx = k // 3, k % 3
            start = front + (ky - 1) * wp + (kx - 1)              # static offset
            xk = lax.slice_in_dim(xv, start, start + lout, axis=1)
            xcat_ref[k * cin_pad:(k + 1) * cin_pad,
                     bi * lout:(bi + 1) * lout] = xk

    # ---- 3x3 conv as ONE (Cout, 9*Cin_pad) x (9*Cin_pad, B*Lout) bf16 matmul
    y = jnp.dot(wc_ref[...], xcat_ref[...],
                preferred_element_type=jnp.float32)               # (Cout, B*Lout)

    bc = b_ref[pl.ds(0, cout), :]                                 # (Cout, 1)
    b1 = b_ref[pl.ds(off_b1, cred), :]                            # (Cred, 1)
    b2 = b_ref[pl.ds(off_b2, cout), :]                            # (Cout, 1)
    bs = b_ref[pl.ds(off_bs, 1), :]                               # (1, 1)

    y = jnp.maximum(y + bc, 0.0)                                  # ReLU

    # ---- interior mask over one Lout segment, built in-kernel (no int div/mod)
    pf = lax.broadcasted_iota(jnp.int32, (1, lout), 1).astype(jnp.float32)
    rowf = jnp.floor((pf + 0.5) * (1.0 / wp))                     # exact for p < 2^20
    colf = pf - rowf * wp
    interior = ((rowf >= 1.0) & (rowf <= float(h))
                & (colf >= 1.0) & (colf <= float(w)))
    mask = interior.astype(jnp.float32)                           # (1, Lout)

    # ---- sSE: 1x1 conv as VPU multiply + sublane reduction over all batches
    s_all = jax.nn.sigmoid(
        jnp.sum(y * ws_ref[...], axis=0, keepdims=True) + bs)     # (1, B*Lout)

    # ---- per-batch cSE + fused scale; y >= 0 => max(y*c, y*s) == y * max(c, s)
    for bi in range(batch):
        yb = lax.slice_in_dim(y, bi * lout, (bi + 1) * lout, axis=1)      # (Cout,Lout)
        z = jnp.sum(yb * mask, axis=1, keepdims=True) * (1.0 / hw)        # (Cout,1)
        hid = jnp.maximum(
            jnp.dot(w1_ref[...], z, preferred_element_type=jnp.float32) + b1, 0.0)
        c_scale = jax.nn.sigmoid(
            jnp.dot(w2_ref[...], hid, preferred_element_type=jnp.float32) + b2)
        sb = lax.slice_in_dim(s_all, bi * lout, (bi + 1) * lout, axis=1)  # (1,Lout)
        o_ref[bi] = yb * jnp.maximum(c_scale, sb)


def _round_up(n, m):
    return ((n + m - 1) // m) * m


def _full_spec(shape):
    zeros = (0,) * len(shape)
    return pl.BlockSpec(shape, lambda i: zeros)


@jax.jit
def attention_block_forward(x_nchw, params):
    """x_nchw: (B, Cin, H, W) float32 -> (B, Cout, H, W) float32."""
    wc, bc, w1, b1, w2, b2, ws, bs = params
    b, cin, h, w = x_nchw.shape
    cout = wc.shape[-1]
    cred = w1.shape[-1]
    hp, wp = h + 2, w + 2
    lp = hp * wp
    lout = _round_up(lp, 128)               # 128-aligned lane segment per batch
    margin = wp + 1                         # max |tap shift| on the flat axis
    front = margin
    lext = _round_up(front + lout + margin, 128)
    cin_pad = _round_up(cin, 16)            # bf16 sublane tile -> aligned scratch stores
    hw = h * w

    # glue: cast to bf16 once, zero-pad channel+spatial, flatten, lane margin
    xbf = x_nchw.astype(jnp.bfloat16)
    xpad = jnp.pad(xbf, ((0, 0), (0, cin_pad - cin), (1, 1), (1, 1)))
    xflat = xpad.reshape(b, cin_pad, lp)
    xext = jnp.pad(xflat, ((0, 0), (0, 0), (front, lext - front - lp)))

    # conv weight HWIO (3,3,Cin,Cout) -> (Cout, 9*Cin_pad); column block k = tap k
    w9 = jnp.transpose(wc.reshape(9, cin, cout), (2, 0, 1))       # (Cout, 9, Cin)
    w9 = jnp.pad(w9, ((0, 0), (0, 0), (0, cin_pad - cin)))
    wc_packed = w9.reshape(cout, 9 * cin_pad).astype(jnp.bfloat16)

    # cSE weights in column-vector (out, in) form; sSE weight as a column
    w1_col = w1.T                             # (Cred, Cout)
    w2_col = w2.T                             # (Cout, Cred)
    ws_col = ws.reshape(cout, 1)              # (Cout, 1)

    # pack the four bias vectors into one sublane-aligned column vector
    def _r8(n):
        return ((n + 7) // 8) * 8
    off_b1 = _r8(cout)
    off_b2 = off_b1 + _r8(cred)
    off_bs = off_b2 + _r8(cout)
    tot = off_bs + 8
    bpack = jnp.zeros((tot, 1), jnp.float32)
    bpack = bpack.at[0:cout, 0].set(bc)
    bpack = bpack.at[off_b1:off_b1 + cred, 0].set(b1)
    bpack = bpack.at[off_b2:off_b2 + cout, 0].set(b2)
    bpack = bpack.at[off_bs, 0].set(bs[0])

    kern = functools.partial(
        attention_block_kernel, batch=b, cin_pad=cin_pad, cout=cout, cred=cred,
        h=h, w=w, wp=wp, lout=lout, hw=hw, front=front,
        off_b1=off_b1, off_b2=off_b2, off_bs=off_bs)

    out = pl.pallas_call(
        kern,
        out_shape=jax.ShapeDtypeStruct((b, cout, lout), jnp.float32),
        grid_spec=pltpu.PrefetchScalarGridSpec(
            num_scalar_prefetch=0,
            grid=(1,),                                  # single step: no grid overhead
            in_specs=[
                _full_spec((b, cin_pad, lext)),
                _full_spec(wc_packed.shape),
                _full_spec(w1_col.shape),
                _full_spec(w2_col.shape),
                _full_spec(ws_col.shape),
                _full_spec(bpack.shape),
            ],
            out_specs=_full_spec((b, cout, lout)),
            scratch_shapes=[pltpu.VMEM((9 * cin_pad, b * lout), jnp.bfloat16)],
        ),
        compiler_params=pltpu.CompilerParams(
            dimension_semantics=("arbitrary",),
        ),
    )(xext, wc_packed, w1_col, w2_col, ws_col, bpack)

    # (B, Cout, Lout) -> crop lane pad -> padded image -> interior NCHW (no transpose)
    return out[:, :, :lp].reshape(b, cout, hp, wp)[:, :, 1:h + 1, 1:w + 1]


def make_params(key, dim, dim_out):
    """Deterministic synthetic parameters (shapes match the torch module)."""
    cred = dim_out // 2
    keys = jax.random.split(key, 8)
    wc = 0.1 * jax.random.normal(keys[0], (3, 3, dim, dim_out), jnp.float32)   # HWIO
    bc = 0.1 * jax.random.normal(keys[1], (dim_out,), jnp.float32)
    w1 = 0.1 * jax.random.normal(keys[2], (dim_out, cred), jnp.float32)        # fc1 (in,out)
    b1 = 0.1 * jax.random.normal(keys[3], (cred,), jnp.float32)
    w2 = 0.1 * jax.random.normal(keys[4], (cred, dim_out), jnp.float32)        # fc2 (in,out)
    b2 = 0.1 * jax.random.normal(keys[5], (dim_out,), jnp.float32)
    ws = 0.1 * jax.random.normal(keys[6], (dim_out, 1), jnp.float32)           # sSE 1x1 conv
    bs = 0.1 * jax.random.normal(keys[7], (1,), jnp.float32)
    return (wc, bc, w1, b1, w2, b2, ws, bs)


def reference_forward(x_nchw, params):
    """Pure-JAX f32 reference mirroring the PyTorch module."""
    wc, bc, w1, b1, w2, b2, ws, bs = params
    x = jnp.transpose(x_nchw, (0, 2, 3, 1))                         # NHWC
    y = lax.conv_general_dilated(
        x, wc, window_strides=(1, 1), padding=((1, 1), (1, 1)),
        dimension_numbers=("NHWC", "HWIO", "NHWC"))
    y = jnp.maximum(y + bc, 0.0)                                    # (B,H,W,C)
    # cSE
    z = jnp.mean(y, axis=(1, 2))                                    # (B,C)
    hid = jnp.maximum(z @ w1 + b1, 0.0)
    c_scale = jax.nn.sigmoid(hid @ w2 + b2)                         # (B,C)
    y_c = y * c_scale[:, None, None, :]
    # sSE
    s = jax.nn.sigmoid(jnp.einsum("bhwc,cd->bhwd", y, ws) + bs)     # (B,H,W,1)
    y_s = y * s
    out = jnp.maximum(y_c, y_s)
    return jnp.transpose(out, (0, 3, 1, 2))                         # NCHW


if __name__ == "__main__":
    B, DIM, DIM_OUT, H, W = 2, 4, 8, 16, 16

    key = jax.random.PRNGKey(0)
    kx, kp = jax.random.split(key)
    x = jax.random.normal(kx, (B, DIM, H, W), jnp.float32)          # NCHW like PyTorch
    params = make_params(kp, DIM, DIM_OUT)

    out = attention_block_forward(x, params)
    out = jax.block_until_ready(out)

    ref = reference_forward(x, params)
    assert out.shape == (B, DIM_OUT, H, W)
    # conv operands are bf16 on the MXU -> loosened tolerance vs the f32 reference
    assert jnp.allclose(out, ref, atol=2e-2, rtol=2e-2)

    print("KERNEL_OK")
</pallas_src>

<mosaic_0001>
module attributes {stable_mosaic.version = 11 : i64} {
  func.func @attention_block_kernel(%arg0: i32, %arg1: memref<2x16x512xbf16, #tpu.memory_space<vmem>>, %arg2: memref<8x144xbf16, #tpu.memory_space<vmem>>, %arg3: memref<4x8xf32, #tpu.memory_space<vmem>>, %arg4: memref<8x4xf32, #tpu.memory_space<vmem>>, %arg5: memref<8x1xf32, #tpu.memory_space<vmem>>, %arg6: memref<32x1xf32, #tpu.memory_space<vmem>>, %arg7: memref<2x8x384xf32, #tpu.memory_space<vmem>>, %arg8: memref<144x768xbf16, #tpu.memory_space<vmem>>) attributes {dimension_semantics = [#tpu.dimension_semantics<arbitrary>], iteration_bounds = array<i64: 1>, scalar_prefetch = 0 : i64, scratch_operands = 1 : i64, tpu.core_type = #tpu.core_type<tc>, window_params = [{pipeline_mode = #tpu.pipeline_mode<synchronous>, transform_indices = @transform_0, window_bounds = array<i64: 2, 16, 512>}, {pipeline_mode = #tpu.pipeline_mode<synchronous>, transform_indices = @transform_1, window_bounds = array<i64: 8, 144>}, {pipeline_mode = #tpu.pipeline_mode<synchronous>, transform_indices = @transform_2, window_bounds = array<i64: 4, 8>}, {pipeline_mode = #tpu.pipeline_mode<synchronous>, transform_indices = @transform_3, window_bounds = array<i64: 8, 4>}, {pipeline_mode = #tpu.pipeline_mode<synchronous>, transform_indices = @transform_4, window_bounds = array<i64: 8, 1>}, {pipeline_mode = #tpu.pipeline_mode<synchronous>, transform_indices = @transform_5, window_bounds = array<i64: 32, 1>}, {pipeline_mode = #tpu.pipeline_mode<synchronous>, transform_indices = @transform_6, window_bounds = array<i64: 2, 8, 384>}]} {
    %c0 = arith.constant 0 : index
    %c0_0 = arith.constant 0 : index
    %c0_1 = arith.constant 0 : index
    %0 = vector.load %arg1[%c0, %c0_0, %c0_1] : memref<2x16x512xbf16, #tpu.memory_space<vmem>>, vector<1x16x512xbf16>
    %1 = vector.shape_cast %0 : vector<1x16x512xbf16> to vector<16x512xbf16>
    %2 = vector.extract_strided_slice %1 {offsets = [0, 0], sizes = [16, 384], strides = [1, 1]} : vector<16x512xbf16> to vector<16x384xbf16>
    %c0_2 = arith.constant 0 : index
    %c0_3 = arith.constant 0 : index
    %3 = vector.load %arg8[%c0_2, %c0_3] : memref<144x768xbf16, #tpu.memory_space<vmem>>, vector<16x384xbf16>
    tpu.vector_store %arg8[%c0_2, %c0_3], %2 {strides = array<i32>} : memref<144x768xbf16, #tpu.memory_space<vmem>>, vector<16x384xbf16>,
    %4 = vector.extract_strided_slice %1 {offsets = [0, 1], sizes = [16, 384], strides = [1, 1]} : vector<16x512xbf16> to vector<16x384xbf16>
    %c16 = arith.constant 16 : index
    %c0_4 = arith.constant 0 : index
    %5 = vector.load %arg8[%c16, %c0_4] : memref<144x768xbf16, #tpu.memory_space<vmem>>, vector<16x384xbf16>
    tpu.vector_store %arg8[%c16, %c0_4], %4 {strides = array<i32>} : memref<144x768xbf16, #tpu.memory_space<vmem>>, vector<16x384xbf16>,
    %6 = vector.extract_strided_slice %1 {offsets = [0, 2], sizes = [16, 384], strides = [1, 1]} : vector<16x512xbf16> to vector<16x384xbf16>
    %c32 = arith.constant 32 : index
    %c0_5 = arith.constant 0 : index
    %7 = vector.load %arg8[%c32, %c0_5] : memref<144x768xbf16, #tpu.memory_space<vmem>>, vector<16x384xbf16>
    tpu.vector_store %arg8[%c32, %c0_5], %6 {strides = array<i32>} : memref<144x768xbf16, #tpu.memory_space<vmem>>, vector<16x384xbf16>,
    %8 = vector.extract_strided_slice %1 {offsets = [0, 18], sizes = [16, 384], strides = [1, 1]} : vector<16x512xbf16> to vector<16x384xbf16>
    %c48 = arith.constant 48 : index
    %c0_6 = arith.constant 0 : index
    %9 = vector.load %arg8[%c48, %c0_6] : memref<144x768xbf16, #tpu.memory_space<vmem>>, vector<16x384xbf16>
    tpu.vector_store %arg8[%c48, %c0_6], %8 {strides = array<i32>} : memref<144x768xbf16, #tpu.memory_space<vmem>>, vector<16x384xbf16>,
    %10 = vector.extract_strided_slice %1 {offsets = [0, 19], sizes = [16, 384], strides = [1, 1]} : vector<16x512xbf16> to vector<16x384xbf16>
    %c64 = arith.constant 64 : index
    %c0_7 = arith.constant 0 : index
    %11 = vector.load %arg8[%c64, %c0_7] : memref<144x768xbf16, #tpu.memory_space<vmem>>, vector<16x384xbf16>
    tpu.vector_store %arg8[%c64, %c0_7], %10 {strides = array<i32>} : memref<144x768xbf16, #tpu.memory_space<vmem>>, vector<16x384xbf16>,
    %12 = vector.extract_strided_slice %1 {offsets = [0, 20], sizes = [16, 384], strides = [1, 1]} : vector<16x512xbf16> to vector<16x384xbf16>
    %c80 = arith.constant 80 : index
    %c0_8 = arith.constant 0 : index
    %13 = vector.load %arg8[%c80, %c0_8] : memref<144x768xbf16, #tpu.memory_space<vmem>>, vector<16x384xbf16>
    tpu.vector_store %arg8[%c80, %c0_8], %12 {strides = array<i32>} : memref<144x768xbf16, #tpu.memory_space<vmem>>, vector<16x384xbf16>,
    %14 = vector.extract_strided_slice %1 {offsets = [0, 36], sizes = [16, 384], strides = [1, 1]} : vector<16x512xbf16> to vector<16x384xbf16>
    %c96 = arith.constant 96 : index
    %c0_9 = arith.constant 0 : index
    %15 = vector.load %arg8[%c96, %c0_9] : memref<144x768xbf16, #tpu.memory_space<vmem>>, vector<16x384xbf16>
    tpu.vector_store %arg8[%c96, %c0_9], %14 {strides = array<i32>} : memref<144x768xbf16, #tpu.memory_space<vmem>>, vector<16x384xbf16>,
    %16 = vector.extract_strided_slice %1 {offsets = [0, 37], sizes = [16, 384], strides = [1, 1]} : vector<16x512xbf16> to vector<16x384xbf16>
    %c112 = arith.constant 112 : index
    %c0_10 = arith.constant 0 : index
    %17 = vector.load %arg8[%c112, %c0_10] : memref<144x768xbf16, #tpu.memory_space<vmem>>, vector<16x384xbf16>
    tpu.vector_store %arg8[%c112, %c0_10], %16 {strides = array<i32>} : memref<144x768xbf16, #tpu.memory_space<vmem>>, vector<16x384xbf16>,
    %18 = vector.extract_strided_slice %1 {offsets = [0, 38], sizes = [16, 384], strides = [1, 1]} : vector<16x512xbf16> to vector<16x384xbf16>
    %c128 = arith.constant 128 : index
    %c0_11 = arith.constant 0 : index
    %19 = vector.load %arg8[%c128, %c0_11] : memref<144x768xbf16, #tpu.memory_space<vmem>>, vector<16x384xbf16>
    tpu.vector_store %arg8[%c128, %c0_11], %18 {strides = array<i32>} : memref<144x768xbf16, #tpu.memory_space<vmem>>, vector<16x384xbf16>,
    %c1 = arith.constant 1 : index
    %c0_12 = arith.constant 0 : index
    %c0_13 = arith.constant 0 : index
    %20 = vector.load %arg1[%c1, %c0_12, %c0_13] : memref<2x16x512xbf16, #tpu.memory_space<vmem>>, vector<1x16x512xbf16>
    %21 = vector.shape_cast %20 : vector<1x16x512xbf16> to vector<16x512xbf16>
    %22 = vector.extract_strided_slice %21 {offsets = [0, 0], sizes = [16, 384], strides = [1, 1]} : vector<16x512xbf16> to vector<16x384xbf16>
    %c0_14 = arith.constant 0 : index
    %c384 = arith.constant 384 : index
    %23 = vector.load %arg8[%c0_14, %c384] : memref<144x768xbf16, #tpu.memory_space<vmem>>, vector<16x384xbf16>
    tpu.vector_store %arg8[%c0_14, %c384], %22 {strides = array<i32>} : memref<144x768xbf16, #tpu.memory_space<vmem>>, vector<16x384xbf16>,
    %24 = vector.extract_strided_slice %21 {offsets = [0, 1], sizes = [16, 384], strides = [1, 1]} : vector<16x512xbf16> to vector<16x384xbf16>
    %c16_15 = arith.constant 16 : index
    %c384_16 = arith.constant 384 : index
    %25 = vector.load %arg8[%c16_15, %c384_16] : memref<144x768xbf16, #tpu.memory_space<vmem>>, vector<16x384xbf16>
    tpu.vector_store %arg8[%c16_15, %c384_16], %24 {strides = array<i32>} : memref<144x768xbf16, #tpu.memory_space<vmem>>, vector<16x384xbf16>,
    %26 = vector.extract_strided_slice %21 {offsets = [0, 2], sizes = [16, 384], strides = [1, 1]} : vector<16x512xbf16> to vector<16x384xbf16>
    %c32_17 = arith.constant 32 : index
    %c384_18 = arith.constant 384 : index
    %27 = vector.load %arg8[%c32_17, %c384_18] : memref<144x768xbf16, #tpu.memory_space<vmem>>, vector<16x384xbf16>
    tpu.vector_store %arg8[%c32_17, %c384_18], %26 {strides = array<i32>} : memref<144x768xbf16, #tpu.memory_space<vmem>>, vector<16x384xbf16>,
    %28 = vector.extract_strided_slice %21 {offsets = [0, 18], sizes = [16, 384], strides = [1, 1]} : vector<16x512xbf16> to vector<16x384xbf16>
    %c48_19 = arith.constant 48 : index
    %c384_20 = arith.constant 384 : index
    %29 = vector.load %arg8[%c48_19, %c384_20] : memref<144x768xbf16, #tpu.memory_space<vmem>>, vector<16x384xbf16>
    tpu.vector_store %arg8[%c48_19, %c384_20], %28 {strides = array<i32>} : memref<144x768xbf16, #tpu.memory_space<vmem>>, vector<16x384xbf16>,
    %30 = vector.extract_strided_slice %21 {offsets = [0, 19], sizes = [16, 384], strides = [1, 1]} : vector<16x512xbf16> to vector<16x384xbf16>
    %c64_21 = arith.constant 64 : index
    %c384_22 = arith.constant 384 : index
    %31 = vector.load %arg8[%c64_21, %c384_22] : memref<144x768xbf16, #tpu.memory_space<vmem>>, vector<16x384xbf16>
    tpu.vector_store %arg8[%c64_21, %c384_22], %30 {strides = array<i32>} : memref<144x768xbf16, #tpu.memory_space<vmem>>, vector<16x384xbf16>,
    %32 = vector.extract_strided_slice %21 {offsets = [0, 20], sizes = [16, 384], strides = [1, 1]} : vector<16x512xbf16> to vector<16x384xbf16>
    %c80_23 = arith.constant 80 : index
    %c384_24 = arith.constant 384 : index
    %33 = vector.load %arg8[%c80_23, %c384_24] : memref<144x768xbf16, #tpu.memory_space<vmem>>, vector<16x384xbf16>
    tpu.vector_store %arg8[%c80_23, %c384_24], %32 {strides = array<i32>} : memref<144x768xbf16, #tpu.memory_space<vmem>>, vector<16x384xbf16>,
    %34 = vector.extract_strided_slice %21 {offsets = [0, 36], sizes = [16, 384], strides = [1, 1]} : vector<16x512xbf16> to vector<16x384xbf16>
    %c96_25 = arith.constant 96 : index
    %c384_26 = arith.constant 384 : index
    %35 = vector.load %arg8[%c96_25, %c384_26] : memref<144x768xbf16, #tpu.memory_space<vmem>>, vector<16x384xbf16>
    tpu.vector_store %arg8[%c96_25, %c384_26], %34 {strides = array<i32>} : memref<144x768xbf16, #tpu.memory_space<vmem>>, vector<16x384xbf16>,
    %36 = vector.extract_strided_slice %21 {offsets = [0, 37], sizes = [16, 384], strides = [1, 1]} : vector<16x512xbf16> to vector<16x384xbf16>
    %c112_27 = arith.constant 112 : index
    %c384_28 = arith.constant 384 : index
    %37 = vector.load %arg8[%c112_27, %c384_28] : memref<144x768xbf16, #tpu.memory_space<vmem>>, vector<16x384xbf16>
    tpu.vector_store %arg8[%c112_27, %c384_28], %36 {strides = array<i32>} : memref<144x768xbf16, #tpu.memory_space<vmem>>, vector<16x384xbf16>,
    %38 = vector.extract_strided_slice %21 {offsets = [0, 38], sizes = [16, 384], strides = [1, 1]} : vector<16x512xbf16> to vector<16x384xbf16>
    %c128_29 = arith.constant 128 : index
    %c384_30 = arith.constant 384 : index
    %39 = vector.load %arg8[%c128_29, %c384_30] : memref<144x768xbf16, #tpu.memory_space<vmem>>, vector<16x384xbf16>
    tpu.vector_store %arg8[%c128_29, %c384_30], %38 {strides = array<i32>} : memref<144x768xbf16, #tpu.memory_space<vmem>>, vector<16x384xbf16>,
    %c0_31 = arith.constant 0 : index
    %c0_32 = arith.constant 0 : index
    %40 = vector.load %arg2[%c0_31, %c0_32] : memref<8x144xbf16, #tpu.memory_space<vmem>>, vector<8x144xbf16>
    %c0_33 = arith.constant 0 : index
    %c0_34 = arith.constant 0 : index
    %41 = vector.load %arg8[%c0_33, %c0_34] : memref<144x768xbf16, #tpu.memory_space<vmem>>, vector<144x768xbf16>
    %cst = arith.constant dense<0.000000e+00> : vector<8x768xf32>
    %42 = tpu.matmul %40, %41, %cst {dimension_numbers = #tpu.dot_dimension_numbers<[1], [0], [0], [1], [0, 0, 1, 1], [], []>} : vector<8x144xbf16>, vector<144x768xbf16>, vector<8x768xf32> -> vector<8x768xf32>
    %c0_35 = arith.constant 0 : index
    %c0_36 = arith.constant 0 : index
    %43 = vector.load %arg6[%c0_35, %c0_36] : memref<32x1xf32, #tpu.memory_space<vmem>>, vector<8x1xf32>
    %c8 = arith.constant 8 : index
    %c0_37 = arith.constant 0 : index
    %44 = vector.load %arg6[%c8, %c0_37] : memref<32x1xf32, #tpu.memory_space<vmem>>, vector<4x1xf32>
    %c16_38 = arith.constant 16 : index
    %c0_39 = arith.constant 0 : index
    %45 = vector.load %arg6[%c16_38, %c0_39] : memref<32x1xf32, #tpu.memory_space<vmem>>, vector<8x1xf32>
    %c24 = arith.constant 24 : index
    %c0_40 = arith.constant 0 : index
    %46 = vector.load %arg6[%c24, %c0_40] : memref<32x1xf32, #tpu.memory_space<vmem>>, vector<1x1xf32>
    %47 = vector.broadcast %43 : vector<8x1xf32> to vector<8x768xf32>
    %48 = arith.addf %42, %47 : vector<8x768xf32>
    %cst_41 = arith.constant 0.000000e+00 : f32
    %49 = vector.broadcast %cst_41 : f32 to vector<8x768xf32>
    %50 = arith.maximumf %48, %49 : vector<8x768xf32>
    %51 = tpu.iota {dimensions = array<i32: 1>} : vector<1x384xi32>
    %52 = arith.sitofp %51 : vector<1x384xi32> to vector<1x384xf32>
    %cst_42 = arith.constant 5.000000e-01 : f32
    %53 = vector.broadcast %cst_42 : f32 to vector<1x384xf32>
    %54 = arith.addf %52, %53 : vector<1x384xf32>
    %cst_43 = arith.constant 0.055555556 : f32
    %55 = vector.broadcast %cst_43 : f32 to vector<1x384xf32>
    %56 = arith.mulf %54, %55 : vector<1x384xf32>
    %57 = math.floor %56 : vector<1x384xf32>
    %cst_44 = arith.constant 1.800000e+01 : f32
    %58 = vector.broadcast %cst_44 : f32 to vector<1x384xf32>
    %59 = arith.mulf %57, %58 : vector<1x384xf32>
    %60 = arith.subf %52, %59 : vector<1x384xf32>
    %cst_45 = arith.constant 1.000000e+00 : f32
    %61 = vector.broadcast %cst_45 : f32 to vector<1x384xf32>
    %62 = arith.cmpf oge, %57, %61 : vector<1x384xf32>
    %cst_46 = arith.constant 1.600000e+01 : f32
    %63 = vector.broadcast %cst_46 : f32 to vector<1x384xf32>
    %64 = arith.cmpf ole, %57, %63 : vector<1x384xf32>
    %65 = arith.andi %62, %64 : vector<1x384xi1>
    %cst_47 = arith.constant 1.000000e+00 : f32
    %66 = vector.broadcast %cst_47 : f32 to vector<1x384xf32>
    %67 = arith.cmpf oge, %60, %66 : vector<1x384xf32>
    %68 = arith.andi %65, %67 : vector<1x384xi1>
    %cst_48 = arith.constant 1.600000e+01 : f32
    %69 = vector.broadcast %cst_48 : f32 to vector<1x384xf32>
    %70 = arith.cmpf ole, %60, %69 : vector<1x384xf32>
    %71 = arith.andi %68, %70 : vector<1x384xi1>
    %72 = arith.extui %71 : vector<1x384xi1> to vector<1x384xi32>
    %73 = arith.sitofp %72 : vector<1x384xi32> to vector<1x384xf32>
    %c0_49 = arith.constant 0 : index
    %c0_50 = arith.constant 0 : index
    %74 = vector.load %arg5[%c0_49, %c0_50] : memref<8x1xf32, #tpu.memory_space<vmem>>, vector<8x1xf32>
    %75 = vector.broadcast %74 : vector<8x1xf32> to vector<8x768xf32>
    %76 = arith.mulf %50, %75 : vector<8x768xf32>
    %cst_51 = arith.constant dense<0.000000e+00> : vector<768xf32>
    %77 = vector.multi_reduction <add>, %76, %cst_51 [0] : vector<8x768xf32> to vector<768xf32>
    %78 = vector.shape_cast %77 : vector<768xf32> to vector<1x768xf32>
    %79 = vector.broadcast %46 : vector<1x1xf32> to vector<1x768xf32>
    %80 = arith.addf %78, %79 : vector<1x768xf32>
    %81 = arith.negf %80 : vector<1x768xf32>
    %82 = math.exp %81 : vector<1x768xf32>
    %cst_52 = arith.constant 1.000000e+00 : f32
    %83 = vector.broadcast %cst_52 : f32 to vector<1x768xf32>
    %84 = arith.addf %83, %82 : vector<1x768xf32>
    %85 = arith.divf %83, %84 : vector<1x768xf32>
    %86 = vector.extract_strided_slice %50 {offsets = [0, 0], sizes = [8, 384], strides = [1, 1]} : vector<8x768xf32> to vector<8x384xf32>
    %87 = vector.broadcast %73 : vector<1x384xf32> to vector<8x384xf32>
    %88 = arith.mulf %86, %87 : vector<8x384xf32>
    %cst_53 = arith.constant dense<0.000000e+00> : vector<8xf32>
    %89 = vector.multi_reduction <add>, %88, %cst_53 [1] : vector<8x384xf32> to vector<8xf32>
    %90 = vector.shape_cast %89 : vector<8xf32> to vector<8x1xf32>
    %cst_54 = arith.constant 3.906250e-03 : f32
    %91 = vector.broadcast %cst_54 : f32 to vector<8x1xf32>
    %92 = arith.mulf %90, %91 : vector<8x1xf32>
    %c0_55 = arith.constant 0 : index
    %c0_56 = arith.constant 0 : index
    %93 = vector.load %arg3[%c0_55, %c0_56] : memref<4x8xf32, #tpu.memory_space<vmem>>, vector<4x8xf32>
    %cst_57 = arith.constant dense<0.000000e+00> : vector<4x1xf32>
    %94 = tpu.matmul %93, %92, %cst_57 {dimension_numbers = #tpu.dot_dimension_numbers<[1], [0], [0], [1], [0, 0, 1, 1], [], []>} : vector<4x8xf32>, vector<8x1xf32>, vector<4x1xf32> -> vector<4x1xf32>
    %95 = arith.addf %94, %44 : vector<4x1xf32>
    %cst_58 = arith.constant 0.000000e+00 : f32
    %96 = vector.broadcast %cst_58 : f32 to vector<4x1xf32>
    %97 = arith.maximumf %95, %96 : vector<4x1xf32>
    %c0_59 = arith.constant 0 : index
    %c0_60 = arith.constant 0 : index
    %98 = vector.load %arg4[%c0_59, %c0_60] : memref<8x4xf32, #tpu.memory_space<vmem>>, vector<8x4xf32>
    %cst_61 = arith.constant dense<0.000000e+00> : vector<8x1xf32>
    %99 = tpu.matmul %98, %97, %cst_61 {dimension_numbers = #tpu.dot_dimension_numbers<[1], [0], [0], [1], [0, 0, 1, 1], [], []>} : vector<8x4xf32>, vector<4x1xf32>, vector<8x1xf32> -> vector<8x1xf32>
    %100 = arith.addf %99, %45 : vector<8x1xf32>
    %101 = arith.negf %100 : vector<8x1xf32>
    %102 = math.exp %101 : vector<8x1xf32>
    %cst_62 = arith.constant 1.000000e+00 : f32
    %103 = vector.broadcast %cst_62 : f32 to vector<8x1xf32>
    %104 = arith.addf %103, %102 : vector<8x1xf32>
    %105 = arith.divf %103, %104 : vector<8x1xf32>
    %106 = vector.extract_strided_slice %85 {offsets = [0, 0], sizes = [1, 384], strides = [1, 1]} : vector<1x768xf32> to vector<1x384xf32>
    %107 = vector.broadcast %105 : vector<8x1xf32> to vector<8x384xf32>
    %108 = vector.broadcast %106 : vector<1x384xf32> to vector<8x384xf32>
    %109 = arith.maximumf %107, %108 : vector<8x384xf32>
    %110 = arith.mulf %86, %109 : vector<8x384xf32>
    %c0_63 = arith.constant 0 : index
    %c0_64 = arith.constant 0 : index
    %c0_65 = arith.constant 0 : index
    %111 = vector.load %arg7[%c0_63, %c0_64, %c0_65] : memref<2x8x384xf32, #tpu.memory_space<vmem>>, vector<1x8x384xf32>
    %112 = vector.shape_cast %111 : vector<1x8x384xf32> to vector<8x384xf32>
    %113 = vector.shape_cast %110 : vector<8x384xf32> to vector<1x8x384xf32>
    tpu.vector_store %arg7[%c0_63, %c0_64, %c0_65], %113 {strides = array<i32>} : memref<2x8x384xf32, #tpu.memory_space<vmem>>, vector<1x8x384xf32>,
    %114 = vector.extract_strided_slice %50 {offsets = [0, 384], sizes = [8, 384], strides = [1, 1]} : vector<8x768xf32> to vector<8x384xf32>
    %115 = vector.broadcast %73 : vector<1x384xf32> to vector<8x384xf32>
    %116 = arith.mulf %114, %115 : vector<8x384xf32>
    %cst_66 = arith.constant dense<0.000000e+00> : vector<8xf32>
    %117 = vector.multi_reduction <add>, %116, %cst_66 [1] : vector<8x384xf32> to vector<8xf32>
    %118 = vector.shape_cast %117 : vector<8xf32> to vector<8x1xf32>
    %cst_67 = arith.constant 3.906250e-03 : f32
    %119 = vector.broadcast %cst_67 : f32 to vector<8x1xf32>
    %120 = arith.mulf %118, %119 : vector<8x1xf32>
    %c0_68 = arith.constant 0 : index
    %c0_69 = arith.constant 0 : index
    %121 = vector.load %arg3[%c0_68, %c0_69] : memref<4x8xf32, #tpu.memory_space<vmem>>, vector<4x8xf32>
    %cst_70 = arith.constant dense<0.000000e+00> : vector<4x1xf32>
    %122 = tpu.matmul %121, %120, %cst_70 {dimension_numbers = #tpu.dot_dimension_numbers<[1], [0], [0], [1], [0, 0, 1, 1], [], []>} : vector<4x8xf32>, vector<8x1xf32>, vector<4x1xf32> -> vector<4x1xf32>
    %123 = arith.addf %122, %44 : vector<4x1xf32>
    %cst_71 = arith.constant 0.000000e+00 : f32
    %124 = vector.broadcast %cst_71 : f32 to vector<4x1xf32>
    %125 = arith.maximumf %123, %124 : vector<4x1xf32>
    %c0_72 = arith.constant 0 : index
    %c0_73 = arith.constant 0 : index
    %126 = vector.load %arg4[%c0_72, %c0_73] : memref<8x4xf32, #tpu.memory_space<vmem>>, vector<8x4xf32>
    %cst_74 = arith.constant dense<0.000000e+00> : vector<8x1xf32>
    %127 = tpu.matmul %126, %125, %cst_74 {dimension_numbers = #tpu.dot_dimension_numbers<[1], [0], [0], [1], [0, 0, 1, 1], [], []>} : vector<8x4xf32>, vector<4x1xf32>, vector<8x1xf32> -> vector<8x1xf32>
    %128 = arith.addf %127, %45 : vector<8x1xf32>
    %129 = arith.negf %128 : vector<8x1xf32>
    %130 = math.exp %129 : vector<8x1xf32>
    %cst_75 = arith.constant 1.000000e+00 : f32
    %131 = vector.broadcast %cst_75 : f32 to vector<8x1xf32>
    %132 = arith.addf %131, %130 : vector<8x1xf32>
    %133 = arith.divf %131, %132 : vector<8x1xf32>
    %134 = vector.extract_strided_slice %85 {offsets = [0, 384], sizes = [1, 384], strides = [1, 1]} : vector<1x768xf32> to vector<1x384xf32>
    %135 = vector.broadcast %133 : vector<8x1xf32> to vector<8x384xf32>
    %136 = vector.broadcast %134 : vector<1x384xf32> to vector<8x384xf32>
    %137 = arith.maximumf %135, %136 : vector<8x384xf32>
    %138 = arith.mulf %114, %137 : vector<8x384xf32>
    %c1_76 = arith.constant 1 : index
    %c0_77 = arith.constant 0 : index
    %c0_78 = arith.constant 0 : index
    %139 = vector.load %arg7[%c1_76, %c0_77, %c0_78] : memref<2x8x384xf32, #tpu.memory_space<vmem>>, vector<1x8x384xf32>
    %140 = vector.shape_cast %139 : vector<1x8x384xf32> to vector<8x384xf32>
    %141 = vector.shape_cast %138 : vector<8x384xf32> to vector<1x8x384xf32>
    tpu.vector_store %arg7[%c1_76, %c0_77, %c0_78], %141 {strides = array<i32>} : memref<2x8x384xf32, #tpu.memory_space<vmem>>, vector<1x8x384xf32>,
    return
  }
  func.func @transform_0(%arg0: i32) -> (i32, i32, i32) {
    %c0_i32 = arith.constant 0 : i32
    %c0_i32_0 = arith.constant 0 : i32
    %c0_i32_1 = arith.constant 0 : i32
    %c0_i32_2 = arith.constant 0 : i32
    return %c0_i32, %c0_i32_0, %c0_i32_1 : i32, i32, i32
  }
  func.func @transform_1(%arg0: i32) -> (i32, i32) {
    %c0_i32 = arith.constant 0 : i32
    %c0_i32_0 = arith.constant 0 : i32
    %c0_i32_1 = arith.constant 0 : i32
    return %c0_i32, %c0_i32_0 : i32, i32
  }
  func.func @transform_2(%arg0: i32) -> (i32, i32) {
    %c0_i32 = arith.constant 0 : i32
    %c0_i32_0 = arith.constant 0 : i32
    %c0_i32_1 = arith.constant 0 : i32
    return %c0_i32, %c0_i32_0 : i32, i32
  }
  func.func @transform_3(%arg0: i32) -> (i32, i32) {
    %c0_i32 = arith.constant 0 : i32
    %c0_i32_0 = arith.constant 0 : i32
    %c0_i32_1 = arith.constant 0 : i32
    return %c0_i32, %c0_i32_0 : i32, i32
  }
  func.func @transform_4(%arg0: i32) -> (i32, i32) {
    %c0_i32 = arith.constant 0 : i32
    %c0_i32_0 = arith.constant 0 : i32
    %c0_i32_1 = arith.constant 0 : i32
    return %c0_i32, %c0_i32_0 : i32, i32
  }
  func.func @transform_5(%arg0: i32) -> (i32, i32) {
    %c0_i32 = arith.constant 0 : i32
    %c0_i32_0 = arith.constant 0 : i32
    %c0_i32_1 = arith.constant 0 : i32
    return %c0_i32, %c0_i32_0 : i32, i32
  }
  func.func @transform_6(%arg0: i32) -> (i32, i32, i32) {
    %c0_i32 = arith.constant 0 : i32
    %c0_i32_0 = arith.constant 0 : i32
    %c0_i32_1 = arith.constant 0 : i32
    %c0_i32_2 = arith.constant 0 : i32
    return %c0_i32, %c0_i32_0, %c0_i32_1 : i32, i32, i32
  }
}

</mosaic_0001>

<llo_original>
// kernel: attention_block_forward.1
$region0: #{attention_block_forward.1}
  #allocation0 [shape = 'u32[]', space=smem, size = 0x4, offset = 0x4, fixed_abs, tag = 'smem constant byte address 0x4 - core index']
  #allocation1 [shape = 'u32[72,128]{1,0:T(1,128)}', space=vmem, size = 0x9000, scoped, tag = 'internal scratch']
  #allocation2 [shape = 'bf16[144,768]{1,0:T(8,128)(2,1)}', space=vmem, size = 0x36000, scoped, tag = 'scratch operand']
  %s0 = inlined_call_operand.vmem [shape: bf16[2,16,512], index: 0, kind: input, shape index: {}]
  %s1 = inlined_call_operand.vmem [shape: bf16[8,144], index: 1, kind: input, shape index: {}]
  %s2 = inlined_call_operand.vmem [shape: f32[4,8], index: 2, kind: input, shape index: {}]
  %s3 = inlined_call_operand.vmem [shape: f32[8,4], index: 3, kind: input, shape index: {}]
  %s4 = inlined_call_operand.vmem [shape: f32[8,1], index: 4, kind: input, shape index: {}]
  %s5 = inlined_call_operand.vmem [shape: f32[32,1], index: 5, kind: input, shape index: {}]
  %s6 = inlined_call_operand.vmem [shape: f32[2,8,384], index: 6, kind: output, shape index: {}]
  %s7 = sld [smem:[#allocation0]]
  $region34: #{attention_block_forward.1} parent=0
    _
  %s9 = ssub.s32 1, %s7
  %s10 = scalar_select 0, %s9, %s7
  // Predicated region
  $region2: #{attention_block_forward.1} parent=0 // pred_check
    _
  $region3: #{attention_block_forward.1} parent=0 // pred_check_branch
    %12 = sbr.rel (0) target = $region5
  $region4: #{attention_block_forward.1} parent=0 // pred_region
    _
  $region5: #{attention_block_forward.1} parent=0 // pred_fallthru
    _
  // Predicated region
  $region6: #{attention_block_forward.1} parent=0 // pred_check
    _
  $region7: #{attention_block_forward.1} parent=0 // pred_check_branch
    %14 = sbr.rel (0) target = $region9
  $region8: #{attention_block_forward.1} parent=0 // pred_region
    _
  $region9: #{attention_block_forward.1} parent=0 // pred_fallthru
    _
  // Predicated region
  $region10: #{attention_block_forward.1} parent=0 // pred_check
    _
  $region11: #{attention_block_forward.1} parent=0 // pred_check_branch
    %16 = sbr.rel (0) target = $region13
  $region12: #{attention_block_forward.1} parent=0 // pred_region
    _
  $region13: #{attention_block_forward.1} parent=0 // pred_fallthru
    _
  // Predicated region
  $region14: #{attention_block_forward.1} parent=0 // pred_check
    _
  $region15: #{attention_block_forward.1} parent=0 // pred_check_branch
    %18 = sbr.rel (0) target = $region17
  $region16: #{attention_block_forward.1} parent=0 // pred_region
    _
  $region17: #{attention_block_forward.1} parent=0 // pred_fallthru
    _
  // Predicated region
  $region18: #{attention_block_forward.1} parent=0 // pred_check
    _
  $region19: #{attention_block_forward.1} parent=0 // pred_check_branch
    %20 = sbr.rel (0) target = $region21
  $region20: #{attention_block_forward.1} parent=0 // pred_region
    _
  $region21: #{attention_block_forward.1} parent=0 // pred_fallthru
    _
  // Predicated region
  $region22: #{attention_block_forward.1} parent=0 // pred_check
    _
  $region23: #{attention_block_forward.1} parent=0 // pred_check_branch
    %22 = sbr.rel (0) target = $region25
  $region24: #{attention_block_forward.1} parent=0 // pred_region
    _
  $region25: #{attention_block_forward.1} parent=0 // pred_fallthru
    _
  %v24 = vld [vmem:[%s0] sm:$0xff]
  %v25 = vld [vmem:[%s0 + $0x8] sm:$0xff]
  %v26 = vld [vmem:[%s0 + $0x10] sm:$0xff]
  %v27 = vld [vmem:[%s0 + $0x18] sm:$0xff]
  %28 = vst [vmem:[#allocation2] sm:$0xff] %v24
  %29 = vst [vmem:[#allocation2 + $0x8] sm:$0xf] %v25
  %30 = vst [vmem:[#allocation2 + $0x18] sm:$0xff] %v26
  %31 = vst [vmem:[#allocation2 + $0x20] sm:$0xf] %v27
  %36 = vrot.lane.b32.xlu0 %v24, 127
  %v37 = vpop.permute.xlu0 %36
  %38 = vrot.lane.b32.xlu0 %v25, 127
  %v39 = vpop.permute.xlu0 %38
  %40 = vrot.lane.b32.xlu0 %v26, 127
  %v41 = vpop.permute.xlu0 %40
  %42 = vrot.lane.b32.xlu0 %v27, 127
  %v43 = vpop.permute.xlu0 %42
  %v44 = vrot.slane %v37, 4
  %v45 = vrot.slane %v39, 4
  %v46 = vrot.slane %v41, 4
  %v47 = vrot.slane %v43, 4
  %vm48 = vcmask 1043456
  %v49 = vsel %vm48, %v44, %v45
  %vm50 = vcmask 1039360
  %v51 = vsel %vm50, %v37, %v49
  %v52 = vsel %vm50, %v39, %v45
  %v53 = vsel %vm48, %v46, %v47
  %v54 = vsel %vm50, %v41, %v53
  %v55 = vsel %vm50, %v43, %v47
  %60 = vst [vmem:[#allocation2 + $0x30] sm:$0xff] %v51
  %61 = vst [vmem:[#allocation2 + $0x38] sm:$0xf] %v52
  %62 = vst [vmem:[#allocation2 + $0x48] sm:$0xff] %v54
  %63 = vst [vmem:[#allocation2 + $0x50] sm:$0xf] %v55
  %64 = vrot.lane.b32.xlu0 %v24, 126
  %v65 = vpop.permute.xlu0 %64
  %66 = vrot.lane.b32.xlu0 %v25, 126
  %v67 = vpop.permute.xlu0 %66
  %68 = vrot.lane.b32.xlu0 %v26, 126
  %v69 = vpop.permute.xlu0 %68
  %70 = vrot.lane.b32.xlu0 %v27, 126
  %v71 = vpop.permute.xlu0 %70
  %v72 = vrot.slane %v65, 4
  %v73 = vrot.slane %v67, 4
  %v74 = vrot.slane %v69, 4
  %v75 = vrot.slane %v71, 4
  %v76 = vsel %vm48, %v72, %v73
  %vm77 = vcmask 1031168
  %v78 = vsel %vm77, %v65, %v76
  %v79 = vsel %vm77, %v67, %v73
  %v80 = vsel %vm48, %v74, %v75
  %v81 = vsel %vm77, %v69, %v80
  %v82 = vsel %vm77, %v71, %v75
  %87 = vst [vmem:[#allocation2 + $0x60] sm:$0xff] %v78
  %88 = vst [vmem:[#allocation2 + $0x68] sm:$0xf] %v79
  %89 = vst [vmem:[#allocation2 + $0x78] sm:$0xff] %v81
  %90 = vst [vmem:[#allocation2 + $0x80] sm:$0xf] %v82
  %91 = vrot.lane.b32.xlu0 %v24, 110
  %v92 = vpop.permute.xlu0 %91
  %93 = vrot.lane.b32.xlu0 %v25, 110
  %v94 = vpop.permute.xlu0 %93
  %95 = vrot.lane.b32.xlu0 %v26, 110
  %v96 = vpop.permute.xlu0 %95
  %97 = vrot.lane.b32.xlu0 %v27, 110
  %v98 = vpop.permute.xlu0 %97
  %v99 = vrot.slane %v92, 4
  %v100 = vrot.slane %v94, 4
  %v101 = vrot.slane %v96, 4
  %v102 = vrot.slane %v98, 4
  %v103 = vsel %vm48, %v99, %v100
  %vm104 = vcmask 900096
  %v105 = vsel %vm104, %v92, %v103
  %v106 = vsel %vm104, %v94, %v100
  %v107 = vsel %vm48, %v101, %v102
  %v108 = vsel %vm104, %v96, %v107
  %v109 = vsel %vm104, %v98, %v102
  %114 = vst [vmem:[#allocation2 + $0x90] sm:$0xff] %v105
  %115 = vst [vmem:[#allocation2 + $0x98] sm:$0xf] %v106
  %116 = vst [vmem:[#allocation2 + $0xa8] sm:$0xff] %v108
  %117 = vst [vmem:[#allocation2 + $0xb0] sm:$0xf] %v109
  %118 = vrot.lane.b32.xlu0 %v24, 109
  %v119 = vpop.permute.xlu0 %118
  %120 = vrot.lane.b32.xlu0 %v25, 109
  %v121 = vpop.permute.xlu0 %120
  %122 = vrot.lane.b32.xlu0 %v26, 109
  %v123 = vpop.permute.xlu0 %122
  %124 = vrot.lane.b32.xlu0 %v27, 109
  %v125 = vpop.permute.xlu0 %124
  %v126 = vrot.slane %v119, 4
  %v127 = vrot.slane %v121, 4
  %v128 = vrot.slane %v123, 4
  %v129 = vrot.slane %v125, 4
  %v130 = vsel %vm48, %v126, %v127
  %vm131 = vcmask 891904
  %v132 = vsel %vm131, %v119, %v130
  %v133 = vsel %vm131, %v121, %v127
  %v134 = vsel %vm48, %v128, %v129
  %v135 = vsel %vm131, %v123, %v134
  %v136 = vsel %vm131, %v125, %v129
  %141 = vst [vmem:[#allocation2 + $0xc0] sm:$0xff] %v132
  %142 = vst [vmem:[#allocation2 + $0xc8] sm:$0xf] %v133
  %143 = vst [vmem:[#allocation2 + $0xd8] sm:$0xff] %v135
  %144 = vst [vmem:[#allocation2 + $0xe0] sm:$0xf] %v136
  %145 = vrot.lane.b32.xlu0 %v24, 108
  %v146 = vpop.permute.xlu0 %145
  %147 = vrot.lane.b32.xlu0 %v25, 108
  %v148 = vpop.permute.xlu0 %147
  %149 = vrot.lane.b32.xlu0 %v26, 108
  %v150 = vpop.permute.xlu0 %149
  %151 = vrot.lane.b32.xlu0 %v27, 108
  %v152 = vpop.permute.xlu0 %151
  %v153 = vrot.slane %v146, 4
  %v154 = vrot.slane %v148, 4
  %v155 = vrot.slane %v150, 4
  %v156 = vrot.slane %v152, 4
  %v157 = vsel %vm48, %v153, %v154
  %vm158 = vcmask 883712
  %v159 = vsel %vm158, %v146, %v157
  %v160 = vsel %vm158, %v148, %v154
  %v161 = vsel %vm48, %v155, %v156
  %v162 = vsel %vm158, %v150, %v161
  %v163 = vsel %vm158, %v152, %v156
  %168 = vst [vmem:[#allocation2 + $0xf0] sm:$0xff] %v159
  %169 = vst [vmem:[#allocation2 + $0xf8] sm:$0xf] %v160
  %170 = vst [vmem:[#allocation2 + $0x108] sm:$0xff] %v162
  %171 = vst [vmem:[#allocation2 + $0x110] sm:$0xf] %v163
  %172 = vrot.lane.b32.xlu0 %v24, 92
  %v173 = vpop.permute.xlu0 %172
  %174 = vrot.lane.b32.xlu0 %v25, 92
  %v175 = vpop.permute.xlu0 %174
  %176 = vrot.lane.b32.xlu0 %v26, 92
  %v177 = vpop.permute.xlu0 %176
  %178 = vrot.lane.b32.xlu0 %v27, 92
  %v179 = vpop.permute.xlu0 %178
  %v180 = vrot.slane %v173, 4
  %v181 = vrot.slane %v175, 4
  %v182 = vrot.slane %v177, 4
  %v183 = vrot.slane %v179, 4
  %v184 = vsel %vm48, %v180, %v181
  %vm185 = vcmask 752640
  %v186 = vsel %vm185, %v173, %v184
  %v187 = vsel %vm185, %v175, %v181
  %v188 = vsel %vm48, %v182, %v183
  %v189 = vsel %vm185, %v177, %v188
  %v190 = vsel %vm185, %v179, %v183
  %195 = vst [vmem:[#allocation2 + $0x120] sm:$0xff] %v186
  %196 = vst [vmem:[#allocation2 + $0x128] sm:$0xf] %v187
  %197 = vst [vmem:[#allocation2 + $0x138] sm:$0xff] %v189
  %198 = vst [vmem:[#allocation2 + $0x140] sm:$0xf] %v190
  %199 = vrot.lane.b32.xlu0 %v24, 91
  %v200 = vpop.permute.xlu0 %199
  %201 = vrot.lane.b32.xlu0 %v25, 91
  %v202 = vpop.permute.xlu0 %201
  %203 = vrot.lane.b32.xlu0 %v26, 91
  %v204 = vpop.permute.xlu0 %203
  %205 = vrot.lane.b32.xlu0 %v27, 91
  %v206 = vpop.permute.xlu0 %205
  %v207 = vrot.slane %v200, 4
  %v208 = vrot.slane %v202, 4
  %v209 = vrot.slane %v204, 4
  %v210 = vrot.slane %v206, 4
  %v211 = vsel %vm48, %v207, %v208
  %vm212 = vcmask 744448
  %v213 = vsel %vm212, %v200, %v211
  %v214 = vsel %vm212, %v202, %v208
  %v215 = vsel %vm48, %v209, %v210
  %v216 = vsel %vm212, %v204, %v215
  %v217 = vsel %vm212, %v206, %v210
  %222 = vst [vmem:[#allocation2 + $0x150] sm:$0xff] %v213
  %223 = vst [vmem:[#allocation2 + $0x158] sm:$0xf] %v214
  %224 = vst [vmem:[#allocation2 + $0x168] sm:$0xff] %v216
  %225 = vst [vmem:[#allocation2 + $0x170] sm:$0xf] %v217
  %226 = vrot.lane.b32.xlu0 %v24, 90
  %v227 = vpop.permute.xlu0 %226
  %228 = vrot.lane.b32.xlu0 %v25, 90
  %v229 = vpop.permute.xlu0 %228
  %230 = vrot.lane.b32.xlu0 %v26, 90
  %v231 = vpop.permute.xlu0 %230
  %232 = vrot.lane.b32.xlu0 %v27, 90
  %v233 = vpop.permute.xlu0 %232
  %v234 = vrot.slane %v227, 4
  %v235 = vrot.slane %v229, 4
  %v236 = vrot.slane %v231, 4
  %v237 = vrot.slane %v233, 4
  %v238 = vsel %vm48, %v234, %v235
  %vm239 = vcmask 736256
  %v240 = vsel %vm239, %v227, %v238
  %v241 = vsel %vm239, %v229, %v235
  %v242 = vsel %vm48, %v236, %v237
  %v243 = vsel %vm239, %v231, %v242
  %v244 = vsel %vm239, %v233, %v237
  %249 = vst [vmem:[#allocation2 + $0x180] sm:$0xff] %v240
  %250 = vst [vmem:[#allocation2 + $0x188] sm:$0xf] %v241
  %251 = vst [vmem:[#allocation2 + $0x198] sm:$0xff] %v243
  %252 = vst [vmem:[#allocation2 + $0x1a0] sm:$0xf] %v244
  %s253 = scalar_lea.vmem %s0, 32
  %v254 = vld [vmem:[%s253] sm:$0xff]
  %v255 = vld [vmem:[%s253 + $0x8] sm:$0xff]
  %v256 = vld [vmem:[%s253 + $0x10] sm:$0xff]
  %v257 = vld [vmem:[%s253 + $0x18] sm:$0xff]
  %258 = vst [vmem:[#allocation2 + $0xc] sm:$0xff] %v254
  %259 = vst [vmem:[#allocation2 + $0x14] sm:$0xf] %v255
  %260 = vst [vmem:[#allocation2 + $0x24] sm:$0xff] %v256
  %261 = vst [vmem:[#allocation2 + $0x2c] sm:$0xf] %v257
  %266 = vrot.lane.b32.xlu0 %v254, 127
  %v267 = vpop.permute.xlu0 %266
  %268 = vrot.lane.b32.xlu0 %v255, 127
  %v269 = vpop.permute.xlu0 %268
  %270 = vrot.lane.b32.xlu0 %v256, 127
  %v271 = vpop.permute.xlu0 %270
  %272 = vrot.lane.b32.xlu0 %v257, 127
  %v273 = vpop.permute.xlu0 %272
  %v274 = vrot.slane %v267, 4
  %v275 = vrot.slane %v269, 4
  %v276 = vrot.slane %v271, 4
  %v277 = vrot.slane %v273, 4
  %v278 = vsel %vm48, %v274, %v275
  %v279 = vsel %vm50, %v267, %v278
  %v280 = vsel %vm50, %v269, %v275
  %v281 = vsel %vm48, %v276, %v277
  %v282 = vsel %vm50, %v271, %v281
  %v283 = vsel %vm50, %v273, %v277
  %288 = vst [vmem:[#allocation2 + $0x3c] sm:$0xff] %v279
  %289 = vst [vmem:[#allocation2 + $0x44] sm:$0xf] %v280
  %290 = vst [vmem:[#allocation2 + $0x54] sm:$0xff] %v282
  %291 = vst [vmem:[#allocation2 + $0x5c] sm:$0xf] %v283
  %292 = vrot.lane.b32.xlu0 %v254, 126
  %v293 = vpop.permute.xlu0 %292
  %294 = vrot.lane.b32.xlu0 %v255, 126
  %v295 = vpop.permute.xlu0 %294
  %296 = vrot.lane.b32.xlu0 %v256, 126
  %v297 = vpop.permute.xlu0 %296
  %298 = vrot.lane.b32.xlu0 %v257, 126
  %v299 = vpop.permute.xlu0 %298
  %v300 = vrot.slane %v293, 4
  %v301 = vrot.slane %v295, 4
  %v302 = vrot.slane %v297, 4
  %v303 = vrot.slane %v299, 4
  %v304 = vsel %vm48, %v300, %v301
  %v305 = vsel %vm77, %v293, %v304
  %v306 = vsel %vm77, %v295, %v301
  %v307 = vsel %vm48, %v302, %v303
  %v308 = vsel %vm77, %v297, %v307
  %v309 = vsel %vm77, %v299, %v303
  %314 = vst [vmem:[#allocation2 + $0x6c] sm:$0xff] %v305
  %315 = vst [vmem:[#allocation2 + $0x74] sm:$0xf] %v306
  %316 = vst [vmem:[#allocation2 + $0x84] sm:$0xff] %v308
  %317 = vst [vmem:[#allocation2 + $0x8c] sm:$0xf] %v309
  %318 = vrot.lane.b32.xlu0 %v254, 110
  %v319 = vpop.permute.xlu0 %318
  %320 = vrot.lane.b32.xlu0 %v255, 110
  %v321 = vpop.permute.xlu0 %320
  %322 = vrot.lane.b32.xlu0 %v256, 110
  %v323 = vpop.permute.xlu0 %322
  %324 = vrot.lane.b32.xlu0 %v257, 110
  %v325 = vpop.permute.xlu0 %324
  %v326 = vrot.slane %v319, 4
  %v327 = vrot.slane %v321, 4
  %v328 = vrot.slane %v323, 4
  %v329 = vrot.slane %v325, 4
  %v330 = vsel %vm48, %v326, %v327
  %v331 = vsel %vm104, %v319, %v330
  %v332 = vsel %vm104, %v321, %v327
  %v333 = vsel %vm48, %v328, %v329
  %v334 = vsel %vm104, %v323, %v333
  %v335 = vsel %vm104, %v325, %v329
  %340 = vst [vmem:[#allocation2 + $0x9c] sm:$0xff] %v331
  %341 = vst [vmem:[#allocation2 + $0xa4] sm:$0xf] %v332
  %342 = vst [vmem:[#allocation2 + $0xb4] sm:$0xff] %v334
  %343 = vst [vmem:[#allocation2 + $0xbc] sm:$0xf] %v335
  %344 = vrot.lane.b32.xlu0 %v254, 109
  %v345 = vpop.permute.xlu0 %344
  %346 = vrot.lane.b32.xlu0 %v255, 109
  %v347 = vpop.permute.xlu0 %346
  %348 = vrot.lane.b32.xlu0 %v256, 109
  %v349 = vpop.permute.xlu0 %348
  %350 = vrot.lane.b32.xlu0 %v257, 109
  %v351 = vpop.permute.xlu0 %350
  %v352 = vrot.slane %v345, 4
  %v353 = vrot.slane %v347, 4
  %v354 = vrot.slane %v349, 4
  %v355 = vrot.slane %v351, 4
  %v356 = vsel %vm48, %v352, %v353
  %v357 = vsel %vm131, %v345, %v356
  %v358 = vsel %vm131, %v347, %v353
  %v359 = vsel %vm48, %v354, %v355
  %v360 = vsel %vm131, %v349, %v359
  %v361 = vsel %vm131, %v351, %v355
  %366 = vst [vmem:[#allocation2 + $0xcc] sm:$0xff] %v357
  %367 = vst [vmem:[#allocation2 + $0xd4] sm:$0xf] %v358
  %368 = vst [vmem:[#allocation2 + $0xe4] sm:$0xff] %v360
  %369 = vst [vmem:[#allocation2 + $0xec] sm:$0xf] %v361
  %370 = vrot.lane.b32.xlu0 %v254, 108
  %v371 = vpop.permute.xlu0 %370
  %372 = vrot.lane.b32.xlu0 %v255, 108
  %v373 = vpop.permute.xlu0 %372
  %374 = vrot.lane.b32.xlu0 %v256, 108
  %v375 = vpop.permute.xlu0 %374
  %376 = vrot.lane.b32.xlu0 %v257, 108
  %v377 = vpop.permute.xlu0 %376
  %v378 = vrot.slane %v371, 4
  %v379 = vrot.slane %v373, 4
  %v380 = vrot.slane %v375, 4
  %v381 = vrot.slane %v377, 4
  %v382 = vsel %vm48, %v378, %v379
  %v383 = vsel %vm158, %v371, %v382
  %v384 = vsel %vm158, %v373, %v379
  %v385 = vsel %vm48, %v380, %v381
  %v386 = vsel %vm158, %v375, %v385
  %v387 = vsel %vm158, %v377, %v381
  %392 = vst [vmem:[#allocation2 + $0xfc] sm:$0xff] %v383
  %393 = vst [vmem:[#allocation2 + $0x104] sm:$0xf] %v384
  %394 = vst [vmem:[#allocation2 + $0x114] sm:$0xff] %v386
  %395 = vst [vmem:[#allocation2 + $0x11c] sm:$0xf] %v387
  %396 = vrot.lane.b32.xlu0 %v254, 92
  %v397 = vpop.permute.xlu0 %396
  %398 = vrot.lane.b32.xlu0 %v255, 92
  %v399 = vpop.permute.xlu0 %398
  %400 = vrot.lane.b32.xlu0 %v256, 92
  %v401 = vpop.permute.xlu0 %400
  %402 = vrot.lane.b32.xlu0 %v257, 92
  %v403 = vpop.permute.xlu0 %402
  %v404 = vrot.slane %v397, 4
  %v405 = vrot.slane %v399, 4
  %v406 = vrot.slane %v401, 4
  %v407 = vrot.slane %v403, 4
  %v408 = vsel %vm48, %v404, %v405
  %v409 = vsel %vm185, %v397, %v408
  %v410 = vsel %vm185, %v399, %v405
  %v411 = vsel %vm48, %v406, %v407
  %v412 = vsel %vm185, %v401, %v411
  %v413 = vsel %vm185, %v403, %v407
  %418 = vst [vmem:[#allocation2 + $0x12c] sm:$0xff] %v409
  %419 = vst [vmem:[#allocation2 + $0x134] sm:$0xf] %v410
  %420 = vst [vmem:[#allocation2 + $0x144] sm:$0xff] %v412
  %421 = vst [vmem:[#allocation2 + $0x14c] sm:$0xf] %v413
  %422 = vrot.lane.b32.xlu0 %v254, 91
  %v423 = vpop.permute.xlu0 %422
  %424 = vrot.lane.b32.xlu0 %v255, 91
  %v425 = vpop.permute.xlu0 %424
  %426 = vrot.lane.b32.xlu0 %v256, 91
  %v427 = vpop.permute.xlu0 %426
  %428 = vrot.lane.b32.xlu0 %v257, 91
  %v429 = vpop.permute.xlu0 %428
  %v430 = vrot.slane %v423, 4
  %v431 = vrot.slane %v425, 4
  %v432 = vrot.slane %v427, 4
  %v433 = vrot.slane %v429, 4
  %v434 = vsel %vm48, %v430, %v431
  %v435 = vsel %vm212, %v423, %v434
  %v436 = vsel %vm212, %v425, %v431
  %v437 = vsel %vm48, %v432, %v433
  %v438 = vsel %vm212, %v427, %v437
  %v439 = vsel %vm212, %v429, %v433
  %444 = vst [vmem:[#allocation2 + $0x15c] sm:$0xff] %v435
  %445 = vst [vmem:[#allocation2 + $0x164] sm:$0xf] %v436
  %446 = vst [vmem:[#allocation2 + $0x174] sm:$0xff] %v438
  %447 = vst [vmem:[#allocation2 + $0x17c] sm:$0xf] %v439
  %448 = vrot.lane.b32.xlu0 %v254, 90
  %v449 = vpop.permute.xlu0 %448
  %450 = vrot.lane.b32.xlu0 %v255, 90
  %v451 = vpop.permute.xlu0 %450
  %452 = vrot.lane.b32.xlu0 %v256, 90
  %v453 = vpop.permute.xlu0 %452
  %454 = vrot.lane.b32.xlu0 %v257, 90
  %v455 = vpop.permute.xlu0 %454
  %v456 = vrot.slane %v449, 4
  %v457 = vrot.slane %v451, 4
  %v458 = vrot.slane %v453, 4
  %v459 = vrot.slane %v455, 4
  %v460 = vsel %vm48, %v456, %v457
  %v461 = vsel %vm239, %v449, %v460
  %v462 = vsel %vm239, %v451, %v457
  %v463 = vsel %vm48, %v458, %v459
  %v464 = vsel %vm239, %v453, %v463
  %v465 = vsel %vm239, %v455, %v459
  %470 = vst [vmem:[#allocation2 + $0x18c] sm:$0xff] %v461
  %471 = vst [vmem:[#allocation2 + $0x194] sm:$0xf] %v462
  %472 = vst [vmem:[#allocation2 + $0x1a4] sm:$0xff] %v464
  %473 = vst [vmem:[#allocation2 + $0x1ac] sm:$0xf] %v465
  %v474 = vld [vmem:[%s1] sm:$0xff]
  %v475 = vld [vmem:[#allocation2] sm:$0xff]
  %v476 = vld [vmem:[#allocation2 + $0x8] sm:$0xff]
  %v477 = vld [vmem:[#allocation2 + $0x10] sm:$0xff]
  %v478 = vld [vmem:[#allocation2 + $0x18] sm:$0xff]
  %v479 = vld [vmem:[#allocation2 + $0x20] sm:$0xff]
  %v480 = vld [vmem:[#allocation2 + $0x28] sm:$0xff]
  %v481 = vld [vmem:[#allocation2 + $0x30] sm:$0xff]
  %v482 = vld [vmem:[#allocation2 + $0x38] sm:$0xff]
  %v483 = vld [vmem:[#allocation2 + $0x40] sm:$0xff]
  %v484 = vld [vmem:[#allocation2 + $0x48] sm:$0xff]
  %v485 = vld [vmem:[#allocation2 + $0x50] sm:$0xff]
  %v486 = vld [vmem:[#allocation2 + $0x58] sm:$0xff]
  %v487 = vld [vmem:[#allocation2 + $0x60] sm:$0xff]
  %v488 = vld [vmem:[#allocation2 + $0x68] sm:$0xff]
  %v489 = vld [vmem:[#allocation2 + $0x70] sm:$0xff]
  %v490 = vld [vmem:[#allocation2 + $0x78] sm:$0xff]
  %v491 = vld [vmem:[#allocation2 + $0x80] sm:$0xff]
  %v492 = vld [vmem:[#allocation2 + $0x88] sm:$0xff]
  %v493 = vld [vmem:[#allocation2 + $0x90] sm:$0xff]
  %v494 = vld [vmem:[#allocation2 + $0x98] sm:$0xff]
  %v495 = vld [vmem:[#allocation2 + $0xa0] sm:$0xff]
  %v496 = vld [vmem:[#allocation2 + $0xa8] sm:$0xff]
  %v497 = vld [vmem:[#allocation2 + $0xb0] sm:$0xff]
  %v498 = vld [vmem:[#allocation2 + $0xb8] sm:$0xff]
  %v499 = vld [vmem:[#allocation2 + $0xc0] sm:$0xff]
  %v500 = vld [vmem:[#allocation2 + $0xc8] sm:$0xff]
  %v501 = vld [vmem:[#allocation2 + $0xd0] sm:$0xff]
  %v502 = vld [vmem:[#allocation2 + $0xd8] sm:$0xff]
  %v503 = vld [vmem:[#allocation2 + $0xe0] sm:$0xff]
  %v504 = vld [vmem:[#allocation2 + $0xe8] sm:$0xff]
  %v505 = vld [vmem:[#allocation2 + $0xf0] sm:$0xff]
  %v506 = vld [vmem:[#allocation2 + $0xf8] sm:$0xff]
  %v507 = vld [vmem:[#allocation2 + $0x100] sm:$0xff]
  %v508 = vld [vmem:[#allocation2 + $0x108] sm:$0xff]
  %v509 = vld [vmem:[#allocation2 + $0x110] sm:$0xff]
  %v510 = vld [vmem:[#allocation2 + $0x118] sm:$0xff]
  %v511 = vld [vmem:[#allocation2 + $0x120] sm:$0xff]
  %v512 = vld [vmem:[#allocation2 + $0x128] sm:$0xff]
  %v513 = vld [vmem:[#allocation2 + $0x130] sm:$0xff]
  %v514 = vld [vmem:[#allocation2 + $0x138] sm:$0xff]
  %v515 = vld [vmem:[#allocation2 + $0x140] sm:$0xff]
  %v516 = vld [vmem:[#allocation2 + $0x148] sm:$0xff]
  %v517 = vld [vmem:[#allocation2 + $0x150] sm:$0xff]
  %v518 = vld [vmem:[#allocation2 + $0x158] sm:$0xff]
  %v519 = vld [vmem:[#allocation2 + $0x160] sm:$0xff]
  %v520 = vld [vmem:[#allocation2 + $0x168] sm:$0xff]
  %v521 = vld [vmem:[#allocation2 + $0x170] sm:$0xff]
  %v522 = vld [vmem:[#allocation2 + $0x178] sm:$0xff]
  %v523 = vld [vmem:[#allocation2 + $0x180] sm:$0xff]
  %v524 = vld [vmem:[#allocation2 + $0x188] sm:$0xff]
  %v525 = vld [vmem:[#allocation2 + $0x190] sm:$0xff]
  %v526 = vld [vmem:[#allocation2 + $0x198] sm:$0xff]
  %v527 = vld [vmem:[#allocation2 + $0x1a0] sm:$0xff]
  %v528 = vld [vmem:[#allocation2 + $0x1a8] sm:$0xff]
  %v529 = vld [vmem:[%s5] sm:$0xff]
  %v530 = vld [vmem:[%s5 + $0x8] sm:$0xf]
  %v531 = vld [vmem:[%s5 + $0x10] sm:$0xff]
  %v532 = vld [vmem:[%s5 + $0x18] sm:$0x1]
  %534 = vset.pattern.permute.xlu0 0
  %535 = vperm.xlu0 %534, %v529
  %v536 = vpop.permute.xlu0 %535
  %v539 = vunpack.c.l.b16 %v474
  %v540 = vunpack.c.h.b16 %v474
  %v541 = vpack.c.b16 %v539, %v539
  %v542 = vpack.c.b16 %v540, %v540
  %v598 = vunpack.c.l.b16 %v475
  %v599 = vunpack.c.h.b16 %v475
  %v600 = vunpack.c.l.b16 %v476
  %v601 = vunpack.c.h.b16 %v476
  %v602 = vunpack.c.l.b16 %v477
  %v603 = vunpack.c.h.b16 %v477
  %v604 = vunpack.c.l.b16 %v478
  %v605 = vunpack.c.h.b16 %v478
  %v606 = vunpack.c.l.b16 %v479
  %v607 = vunpack.c.h.b16 %v479
  %v608 = vunpack.c.l.b16 %v480
  %v609 = vunpack.c.h.b16 %v480
  %v610 = vunpack.c.l.b16 %v481
  %v611 = vunpack.c.h.b16 %v481
  %v612 = vunpack.c.l.b16 %v482
  %v613 = vunpack.c.h.b16 %v482
  %v614 = vunpack.c.l.b16 %v483
  %v615 = vunpack.c.h.b16 %v483
  %v616 = vunpack.c.l.b16 %v484
  %v617 = vunpack.c.h.b16 %v484
  %v618 = vunpack.c.l.b16 %v485
  %v619 = vunpack.c.h.b16 %v485
  %v620 = vunpack.c.l.b16 %v486
  %v621 = vunpack.c.h.b16 %v486
  %v622 = vunpack.c.l.b16 %v487
  %v623 = vunpack.c.h.b16 %v487
  %v624 = vunpack.c.l.b16 %v488
  %v625 = vunpack.c.h.b16 %v488
  %v626 = vunpack.c.l.b16 %v489
  %v627 = vunpack.c.h.b16 %v489
  %v628 = vunpack.c.l.b16 %v490
  %v629 = vunpack.c.h.b16 %v490
  %v630 = vunpack.c.l.b16 %v491
  %v631 = vunpack.c.h.b16 %v491
  %v632 = vunpack.c.l.b16 %v492
  %v633 = vunpack.c.h.b16 %v492
  %v634 = vunpack.c.l.b16 %v493
  %v635 = vunpack.c.h.b16 %v493
  %v636 = vunpack.c.l.b16 %v494
  %v637 = vunpack.c.h.b16 %v494
  %v638 = vunpack.c.l.b16 %v495
  %v639 = vunpack.c.h.b16 %v495
  %v640 = vunpack.c.l.b16 %v496
  %v641 = vunpack.c.h.b16 %v496
  %v642 = vunpack.c.l.b16 %v497
  %v643 = vunpack.c.h.b16 %v497
  %v644 = vunpack.c.l.b16 %v498
  %v645 = vunpack.c.h.b16 %v498
  %v646 = vunpack.c.l.b16 %v499
  %v647 = vunpack.c.h.b16 %v499
  %v648 = vunpack.c.l.b16 %v500
  %v649 = vunpack.c.h.b16 %v500
  %v650 = vunpack.c.l.b16 %v501
  %v651 = vunpack.c.h.b16 %v501
  %v652 = vunpack.c.l.b16 %v502
  %v653 = vunpack.c.h.b16 %v502
  %v654 = vunpack.c.l.b16 %v503
  %v655 = vunpack.c.h.b16 %v503
  %v656 = vunpack.c.l.b16 %v504
  %v657 = vunpack.c.h.b16 %v504
  %v658 = vunpack.c.l.b16 %v505
  %v659 = vunpack.c.h.b16 %v505
  %v660 = vunpack.c.l.b16 %v506
  %v661 = vunpack.c.h.b16 %v506
  %v662 = vunpack.c.l.b16 %v507
  %v663 = vunpack.c.h.b16 %v507
  %v664 = vunpack.c.l.b16 %v508
  %v665 = vunpack.c.h.b16 %v508
  %v666 = vunpack.c.l.b16 %v509
  %v667 = vunpack.c.h.b16 %v509
  %v668 = vunpack.c.l.b16 %v510
  %v669 = vunpack.c.h.b16 %v510
  %v670 = vunpack.c.l.b16 %v511
  %v671 = vunpack.c.h.b16 %v511
  %v672 = vunpack.c.l.b16 %v512
  %v673 = vunpack.c.h.b16 %v512
  %v674 = vunpack.c.l.b16 %v513
  %v675 = vunpack.c.h.b16 %v513
  %v676 = vunpack.c.l.b16 %v514
  %v677 = vunpack.c.h.b16 %v514
  %v678 = vunpack.c.l.b16 %v515
  %v679 = vunpack.c.h.b16 %v515
  %v680 = vunpack.c.l.b16 %v516
  %v681 = vunpack.c.h.b16 %v516
  %v682 = vunpack.c.l.b16 %v517
  %v683 = vunpack.c.h.b16 %v517
  %v684 = vunpack.c.l.b16 %v518
  %v685 = vunpack.c.h.b16 %v518
  %v686 = vunpack.c.l.b16 %v519
  %v687 = vunpack.c.h.b16 %v519
  %v688 = vunpack.c.l.b16 %v520
  %v689 = vunpack.c.h.b16 %v520
  %v690 = vunpack.c.l.b16 %v521
  %v691 = vunpack.c.h.b16 %v521
  %v692 = vunpack.c.l.b16 %v522
  %v693 = vunpack.c.h.b16 %v522
  %v694 = vunpack.c.l.b16 %v523
  %v695 = vunpack.c.h.b16 %v523
  %v696 = vunpack.c.l.b16 %v524
  %v697 = vunpack.c.h.b16 %v524
  %v698 = vunpack.c.l.b16 %v525
  %v699 = vunpack.c.h.b16 %v525
  %v700 = vunpack.c.l.b16 %v526
  %v701 = vunpack.c.h.b16 %v526
  %v702 = vunpack.c.l.b16 %v527
  %v703 = vunpack.c.h.b16 %v527
  %v704 = vunpack.c.l.b16 %v528
  %v705 = vunpack.c.h.b16 %v528
  %v706 = vpack.c.b16 %v604, %v598
  %v707 = vpack.c.b16 %v605, %v599
  %v708 = vpack.c.b16 %v606, %v600
  %v709 = vpack.c.b16 %v607, %v601
  %v710 = vpack.c.b16 %v608, %v602
  %v711 = vpack.c.b16 %v609, %v603
  %v712 = vpack.c.b16 %v616, %v610
  %v713 = vpack.c.b16 %v617, %v611
  %v714 = vpack.c.b16 %v618, %v612
  %v715 = vpack.c.b16 %v619, %v613
  %v716 = vpack.c.b16 %v620, %v614
  %v717 = vpack.c.b16 %v621, %v615
  %v718 = vpack.c.b16 %v628, %v622
  %v719 = vpack.c.b16 %v629, %v623
  %v720 = vpack.c.b16 %v630, %v624
  %v721 = vpack.c.b16 %v631, %v625
  %v722 = vpack.c.b16 %v632, %v626
  %v723 = vpack.c.b16 %v633, %v627
  %v724 = vpack.c.b16 %v640, %v634
  %v725 = vpack.c.b16 %v641, %v635
  %v726 = vpack.c.b16 %v642, %v636
  %v727 = vpack.c.b16 %v643, %v637
  %v728 = vpack.c.b16 %v644, %v638
  %v729 = vpack.c.b16 %v645, %v639
  %v730 = vpack.c.b16 %v652, %v646
  %v731 = vpack.c.b16 %v653, %v647
  %v732 = vpack.c.b16 %v654, %v648
  %v733 = vpack.c.b16 %v655, %v649
  %v734 = vpack.c.b16 %v656, %v650
  %v735 = vpack.c.b16 %v657, %v651
  %v736 = vpack.c.b16 %v664, %v658
  %v737 = vpack.c.b16 %v665, %v659
  %v738 = vpack.c.b16 %v666, %v660
  %v739 = vpack.c.b16 %v667, %v661
  %v740 = vpack.c.b16 %v668, %v662
  %v741 = vpack.c.b16 %v669, %v663
  %v742 = vpack.c.b16 %v676, %v670
  %v743 = vpack.c.b16 %v677, %v671
  %v744 = vpack.c.b16 %v678, %v672
  %v745 = vpack.c.b16 %v679, %v673
  %v746 = vpack.c.b16 %v680, %v674
  %v747 = vpack.c.b16 %v681, %v675
  %v748 = vpack.c.b16 %v688, %v682
  %v749 = vpack.c.b16 %v689, %v683
  %v750 = vpack.c.b16 %v690, %v684
  %v751 = vpack.c.b16 %v691, %v685
  %v752 = vpack.c.b16 %v692, %v686
  %v753 = vpack.c.b16 %v693, %v687
  %v754 = vpack.c.b16 %v700, %v694
  %v755 = vpack.c.b16 %v701, %v695
  %v756 = vpack.c.b16 %v702, %v696
  %v757 = vpack.c.b16 %v703, %v697
  %v758 = vpack.c.b16 %v704, %v698
  %v759 = vpack.c.b16 %v705, %v699
  %vm814 = vcmask 130048
  %v816 = vsel %vm814, %v542, 0
  %818 = vmatpush.bf16.msra.mxu0 %v748
  %819 = vmatpush.bf16.msra.mxu0 %v742
  %820 = vmatpush.bf16.msra.mxu0 %v736
  %821 = vmatpush.bf16.msra.mxu0 %v730
  %822 = vmatpush.bf16.msra.mxu0 %v724
  %823 = vmatpush.bf16.msra.mxu0 %v718
  %824 = vmatpush.bf16.msra.mxu0 %v712
  %825 = vmatpush.bf16.msra.mxu0 %v706
  %826 = vmatmul.bf16.gmra.mxu0 %v541
  %v827 = vpop.f32.mrf.mxu0
  %v828 = vadd.f32 %v536, %v827
  %v829 = vpop.f32.mrf.mxu0
  %830 = vdwg.mxu0
  %831 = vmatpush.bf16.msra.mxu0 0
  %832 = vmatpush.bf16.msra.mxu0 0
  %833 = vmatpush.bf16.msra.mxu0 0
  %834 = vmatpush.bf16.msra.mxu0 0
  %835 = vmatpush.bf16.msra.mxu0 0
  %836 = vmatpush.bf16.msra.mxu0 0
  %837 = vmatpush.bf16.msra.mxu0 0
  %838 = vmatpush.bf16.msra.mxu0 %v754
  %839 = vmatmul.bf16.gmra.mxu0 %v816
  %v840 = vpop.f32.mrf.mxu0
  %v841 = vadd.f32 %v828, %v840
  %v842 = vpop.f32.mrf.mxu0
  %843 = vdwg.mxu0
  %844 = vmatpush.bf16.msra.mxu0 %v749
  %845 = vmatpush.bf16.msra.mxu0 %v743
  %846 = vmatpush.bf16.msra.mxu0 %v737
  %847 = vmatpush.bf16.msra.mxu0 %v731
  %848 = vmatpush.bf16.msra.mxu0 %v725
  %849 = vmatpush.bf16.msra.mxu0 %v719
  %850 = vmatpush.bf16.msra.mxu0 %v713
  %851 = vmatpush.bf16.msra.mxu0 %v707
  %852 = vmatmul.bf16.gmra.mxu0 %v541
  %v853 = vpop.f32.mrf.mxu0
  %v854 = vadd.f32 %v536, %v853
  %v855 = vpop.f32.mrf.mxu0
  %856 = vdwg.mxu0
  %857 = vmatpush.bf16.msra.mxu0 0
  %858 = vmatpush.bf16.msra.mxu0 0
  %859 = vmatpush.bf16.msra.mxu0 0
  %860 = vmatpush.bf16.msra.mxu0 0
  %861 = vmatpush.bf16.msra.mxu0 0
  %862 = vmatpush.bf16.msra.mxu0 0
  %863 = vmatpush.bf16.msra.mxu0 0
  %864 = vmatpush.bf16.msra.mxu0 %v755
  %865 = vmatmul.bf16.gmra.mxu0 %v816
  %v866 = vpop.f32.mrf.mxu0
  %v867 = vadd.f32 %v854, %v866
  %v868 = vpop.f32.mrf.mxu0
  %869 = vdwg.mxu0
  %870 = vmatpush.bf16.msra.mxu0 %v750
  %871 = vmatpush.bf16.msra.mxu0 %v744
  %872 = vmatpush.bf16.msra.mxu0 %v738
  %873 = vmatpush.bf16.msra.mxu0 %v732
  %874 = vmatpush.bf16.msra.mxu0 %v726
  %875 = vmatpush.bf16.msra.mxu0 %v720
  %876 = vmatpush.bf16.msra.mxu0 %v714
  %877 = vmatpush.bf16.msra.mxu0 %v708
  %878 = vmatmul.bf16.gmra.mxu0 %v541
  %v879 = vpop.f32.mrf.mxu0
  %v880 = vadd.f32 %v536, %v879
  %v881 = vpop.f32.mrf.mxu0
  %882 = vdwg.mxu0
  %883 = vmatpush.bf16.msra.mxu0 0
  %884 = vmatpush.bf16.msra.mxu0 0
  %885 = vmatpush.bf16.msra.mxu0 0
  %886 = vmatpush.bf16.msra.mxu0 0
  %887 = vmatpush.bf16.msra.mxu0 0
  %888 = vmatpush.bf16.msra.mxu0 0
  %889 = vmatpush.bf16.msra.mxu0 0
  %890 = vmatpush.bf16.msra.mxu0 %v756
  %891 = vmatmul.bf16.gmra.mxu0 %v816
  %v892 = vpop.f32.mrf.mxu0
  %v893 = vadd.f32 %v880, %v892
  %v894 = vpop.f32.mrf.mxu0
  %895 = vdwg.mxu0
  %896 = vmatpush.bf16.msra.mxu0 %v751
  %897 = vmatpush.bf16.msra.mxu0 %v745
  %898 = vmatpush.bf16.msra.mxu0 %v739
  %899 = vmatpush.bf16.msra.mxu0 %v733
  %900 = vmatpush.bf16.msra.mxu0 %v727
  %901 = vmatpush.bf16.msra.mxu0 %v721
  %902 = vmatpush.bf16.msra.mxu0 %v715
  %903 = vmatpush.bf16.msra.mxu0 %v709
  %904 = vmatmul.bf16.gmra.mxu0 %v541
  %v905 = vpop.f32.mrf.mxu0
  %v906 = vadd.f32 %v536, %v905
  %v907 = vpop.f32.mrf.mxu0
  %908 = vdwg.mxu0
  %909 = vmatpush.bf16.msra.mxu0 0
  %910 = vmatpush.bf16.msra.mxu0 0
  %911 = vmatpush.bf16.msra.mxu0 0
  %912 = vmatpush.bf16.msra.mxu0 0
  %913 = vmatpush.bf16.msra.mxu0 0
  %914 = vmatpush.bf16.msra.mxu0 0
  %915 = vmatpush.bf16.msra.mxu0 0
  %916 = vmatpush.bf16.msra.mxu0 %v757
  %917 = vmatmul.bf16.gmra.mxu0 %v816
  %v918 = vpop.f32.mrf.mxu0
  %v919 = vadd.f32 %v906, %v918
  %v920 = vpop.f32.mrf.mxu0
  %921 = vdwg.mxu0
  %922 = vmatpush.bf16.msra.mxu0 %v752
  %923 = vmatpush.bf16.msra.mxu0 %v746
  %924 = vmatpush.bf16.msra.mxu0 %v740
  %925 = vmatpush.bf16.msra.mxu0 %v734
  %926 = vmatpush.bf16.msra.mxu0 %v728
  %927 = vmatpush.bf16.msra.mxu0 %v722
  %928 = vmatpush.bf16.msra.mxu0 %v716
  %929 = vmatpush.bf16.msra.mxu0 %v710
  %930 = vmatmul.bf16.gmra.mxu0 %v541
  %v931 = vpop.f32.mrf.mxu0
  %v932 = vadd.f32 %v536, %v931
  %v933 = vpop.f32.mrf.mxu0
  %934 = vdwg.mxu0
  %935 = vmatpush.bf16.msra.mxu0 0
  %936 = vmatpush.bf16.msra.mxu0 0
  %937 = vmatpush.bf16.msra.mxu0 0
  %938 = vmatpush.bf16.msra.mxu0 0
  %939 = vmatpush.bf16.msra.mxu0 0
  %940 = vmatpush.bf16.msra.mxu0 0
  %941 = vmatpush.bf16.msra.mxu0 0
  %942 = vmatpush.bf16.msra.mxu0 %v758
  %943 = vmatmul.bf16.gmra.mxu0 %v816
  %v944 = vpop.f32.mrf.mxu0
  %v945 = vadd.f32 %v932, %v944
  %v946 = vpop.f32.mrf.mxu0
  %947 = vdwg.mxu0
  %948 = vmatpush.bf16.msra.mxu0 %v753
  %949 = vmatpush.bf16.msra.mxu0 %v747
  %950 = vmatpush.bf16.msra.mxu0 %v741
  %951 = vmatpush.bf16.msra.mxu0 %v735
  %952 = vmatpush.bf16.msra.mxu0 %v729
  %953 = vmatpush.bf16.msra.mxu0 %v723
  %954 = vmatpush.bf16.msra.mxu0 %v717
  %955 = vmatpush.bf16.msra.mxu0 %v711
  %956 = vmatmul.bf16.gmra.mxu0 %v541
  %v957 = vpop.f32.mrf.mxu0
  %v958 = vadd.f32 %v536, %v957
  %v959 = vpop.f32.mrf.mxu0
  %960 = vdwg.mxu0
  %961 = vmatpush.bf16.msra.mxu0 0
  %962 = vmatpush.bf16.msra.mxu0 0
  %963 = vmatpush.bf16.msra.mxu0 0
  %964 = vmatpush.bf16.msra.mxu0 0
  %965 = vmatpush.bf16.msra.mxu0 0
  %966 = vmatpush.bf16.msra.mxu0 0
  %967 = vmatpush.bf16.msra.mxu0 0
  %968 = vmatpush.bf16.msra.mxu0 %v759
  %969 = vmatmul.bf16.gmra.mxu0 %v816
  %v970 = vpop.f32.mrf.mxu0
  %v971 = vadd.f32 %v958, %v970
  %v972 = vpop.f32.mrf.mxu0
  %973 = vdwg.mxu0
  %v974 = vmax.f32 %v841, 0.0
  %v975 = vmax.f32 %v867, 0.0
  %v976 = vmax.f32 %v893, 0.0
  %v977 = vmax.f32 %v919, 0.0
  %v978 = vmax.f32 %v945, 0.0
  %v979 = vmax.f32 %v971, 0.0
  %v980 = vlaneseq
  %v981 = vand.u32 %v980, 127
  %v982 = vadd.s32 %v981, 128
  %v983 = vadd.s32 %v981, 256
  %v984 = vcvt.s32.f32 %v981
  %v985 = vcvt.s32.f32 %v982
  %v986 = vcvt.s32.f32 %v983
  %v987 = vadd.f32 %v984, 0.5
  %v988 = vadd.f32 %v985, 0.5
  %v989 = vadd.f32 %v986, 0.5
  %v990 = vmul.f32 %v987, 0.055555556
  %v991 = vmul.f32 %v988, 0.055555556
  %v992 = vmul.f32 %v989, 0.055555556
  %v993 = vfloor.f32 %v990
  %v994 = vfloor.f32 %v991
  %v995 = vfloor.f32 %v992
  %v996 = vmul.f32 %v993, 18.0
  %v997 = vmul.f32 %v994, 18.0
  %v998 = vmul.f32 %v995, 18.0
  %v999 = vsub.f32 %v984, %v996
  %v1000 = vsub.f32 %v985, %v997
  %v1001 = vsub.f32 %v986, %v998
  %vm1002 = vcmp.ge.f32.partialorder %v993, 1.0
  %vm1003 = vcmp.ge.f32.partialorder %v994, 1.0
  %vm1004 = vcmp.ge.f32.partialorder %v995, 1.0
  %vm1005 = vcmp.le.f32.partialorder %v993, 16.0
  %vm1006 = vcmp.le.f32.partialorder %v994, 16.0
  %vm1007 = vcmp.le.f32.partialorder %v995, 16.0
  %vm1008 = vmand %vm1002, %vm1005
  %vm1009 = vmand %vm1003, %vm1006
  %vm1010 = vmand %vm1004, %vm1007
  %vm1011 = vcmp.ge.f32.partialorder %v999, 1.0
  %vm1012 = vcmp.ge.f32.partialorder %v1000, 1.0
  %vm1013 = vcmp.ge.f32.partialorder %v1001, 1.0
  %vm1014 = vmand %vm1008, %vm1011
  %vm1015 = vmand %vm1009, %vm1012
  %vm1016 = vmand %vm1010, %vm1013
  %vm1017 = vcmp.le.f32.partialorder %v999, 16.0
  %vm1018 = vcmp.le.f32.partialorder %v1000, 16.0
  %vm1019 = vcmp.le.f32.partialorder %v1001, 16.0
  %vm1020 = vmand %vm1014, %vm1017
  %vm1021 = vmand %vm1015, %vm1018
  %vm1022 = vmand %vm1016, %vm1019
  %v1023 = vsel %vm1020, 1, 0
  %v1024 = vsel %vm1021, 1, 0
  %v1025 = vsel %vm1022, 1, 0
  %v1026 = vcvt.s32.f32 %v1023
  %v1027 = vcvt.s32.f32 %v1024
  %v1028 = vcvt.s32.f32 %v1025
  %v1029 = vld [vmem:[%s4] sm:$0xff]
  %1031 = vset.pattern.permute.xlu0 0
  %1032 = vperm.xlu0 %1031, %v1029
  %v1033 = vpop.permute.xlu0 %1032
  %v1035 = vmul.f32 %v974, %v1033
  %v1036 = vmul.f32 %v975, %v1033
  %v1037 = vmul.f32 %v976, %v1033
  %v1038 = vmul.f32 %v977, %v1033
  %v1039 = vmul.f32 %v978, %v1033
  %v1040 = vmul.f32 %v979, %v1033
  %v1041 = vrot.slane %v1035, 4
  %v1042 = vadd.f32 %v1035, %v1041
  %v1043 = vrot.slane %v1042, 2
  %v1044 = vadd.f32 %v1042, %v1043
  %v1045 = vrot.slane %v1044, 1
  %v1046 = vadd.f32 %v1044, %v1045
  %v1047 = vrot.slane %v1036, 4
  %v1048 = vadd.f32 %v1036, %v1047
  %v1049 = vrot.slane %v1048, 2
  %v1050 = vadd.f32 %v1048, %v1049
  %v1051 = vrot.slane %v1050, 1
  %v1052 = vadd.f32 %v1050, %v1051
  %v1053 = vrot.slane %v1037, 4
  %v1054 = vadd.f32 %v1037, %v1053
  %v1055 = vrot.slane %v1054, 2
  %v1056 = vadd.f32 %v1054, %v1055
  %v1057 = vrot.slane %v1056, 1
  %v1058 = vadd.f32 %v1056, %v1057
  %v1059 = vrot.slane %v1038, 4
  %v1060 = vadd.f32 %v1038, %v1059
  %v1061 = vrot.slane %v1060, 2
  %v1062 = vadd.f32 %v1060, %v1061
  %v1063 = vrot.slane %v1062, 1
  %v1064 = vadd.f32 %v1062, %v1063
  %v1065 = vrot.slane %v1039, 4
  %v1066 = vadd.f32 %v1039, %v1065
  %v1067 = vrot.slane %v1066, 2
  %v1068 = vadd.f32 %v1066, %v1067
  %v1069 = vrot.slane %v1068, 1
  %v1070 = vadd.f32 %v1068, %v1069
  %v1071 = vrot.slane %v1040, 4
  %v1072 = vadd.f32 %v1040, %v1071
  %v1073 = vrot.slane %v1072, 2
  %v1074 = vadd.f32 %v1072, %v1073
  %v1075 = vrot.slane %v1074, 1
  %v1076 = vadd.f32 %v1074, %v1075
  %1078 = vset.pattern.permute.xlu0 0
  %1079 = vperm.xlu0 %1078, %v532
  %v1080 = vpop.permute.xlu0 %1079
  %v1082 = vadd.f32 %v1046, %v1080
  %v1083 = vadd.f32 %v1052, %v1080
  %v1084 = vadd.f32 %v1058, %v1080
  %v1085 = vadd.f32 %v1064, %v1080
  %v1086 = vadd.f32 %v1070, %v1080
  %v1087 = vadd.f32 %v1076, %v1080
  %v1088 = vxor.u32 %v1082, 2147483648
  %v1089 = vxor.u32 %v1083, 2147483648
  %v1090 = vxor.u32 %v1084, 2147483648
  %v1091 = vxor.u32 %v1085, 2147483648
  %v1092 = vxor.u32 %v1086, 2147483648
  %v1093 = vxor.u32 %v1087, 2147483648
  %v1094 = vmul.f32 %v1088, 1.442695
  %v1095 = vpow.pop %v1094
  %v1096 = vmul.f32 %v1089, 1.442695
  %v1097 = vpow.pop %v1096
  %v1098 = vmul.f32 %v1090, 1.442695
  %v1099 = vpow.pop %v1098
  %v1100 = vmul.f32 %v1091, 1.442695
  %v1101 = vpow.pop %v1100
  %v1102 = vmul.f32 %v1092, 1.442695
  %v1103 = vpow.pop %v1102
  %v1104 = vmul.f32 %v1093, 1.442695
  %v1105 = vpow.pop %v1104
  %v1106 = vadd.f32 %v1095, 1.0
  %v1107 = vadd.f32 %v1097, 1.0
  %v1108 = vadd.f32 %v1099, 1.0
  %v1109 = vadd.f32 %v1101, 1.0
  %v1110 = vadd.f32 %v1103, 1.0
  %v1111 = vadd.f32 %v1105, 1.0
  %v1112 = vrcp.pop %v1106
  %v1113 = vmul.f32 %v1106, %v1112
  %v1114 = vsub.f32 1.0, %v1113
  %v1115 = vmul.f32 %v1112, %v1114
  %v1116 = vadd.f32 %v1112, %v1115
  %vm1117 = vweird.f32 %v1106
  %vm1118 = vweird.f32 %v1112
  %vm1119 = vmor %vm1117, %vm1118
  %v1120 = vsel %vm1119, %v1112, %v1116
  %v1121 = vand.u32 2147483647, %v1106
  %vm1122 = vcmp.eq.f32.partialorder %v1121, 8.507059e+37
  %v1123 = vand.u32 %v1106, 2147483648
  %v1124 = vor.u32 1.1754944e-38, %v1123
  %v1125 = vsel %vm1122, %v1124, %v1120
  %v1126 = vmul.f32 1.0, %v1125
  %v1127 = vrcp.pop %v1107
  %v1128 = vmul.f32 %v1107, %v1127
  %v1129 = vsub.f32 1.0, %v1128
  %v1130 = vmul.f32 %v1127, %v1129
  %v1131 = vadd.f32 %v1127, %v1130
  %vm1132 = vweird.f32 %v1107
  %vm1133 = vweird.f32 %v1127
  %vm1134 = vmor %vm1132, %vm1133
  %v1135 = vsel %vm1134, %v1127, %v1131
  %v1136 = vand.u32 2147483647, %v1107
  %vm1137 = vcmp.eq.f32.partialorder %v1136, 8.507059e+37
  %v1138 = vand.u32 %v1107, 2147483648
  %v1139 = vor.u32 1.1754944e-38, %v1138
  %v1140 = vsel %vm1137, %v1139, %v1135
  %v1141 = vmul.f32 1.0, %v1140
  %v1142 = vrcp.pop %v1108
  %v1143 = vmul.f32 %v1108, %v1142
  %v1144 = vsub.f32 1.0, %v1143
  %v1145 = vmul.f32 %v1142, %v1144
  %v1146 = vadd.f32 %v1142, %v1145
  %vm1147 = vweird.f32 %v1108
  %vm1148 = vweird.f32 %v1142
  %vm1149 = vmor %vm1147, %vm1148
  %v1150 = vsel %vm1149, %v1142, %v1146
  %v1151 = vand.u32 2147483647, %v1108
  %vm1152 = vcmp.eq.f32.partialorder %v1151, 8.507059e+37
  %v1153 = vand.u32 %v1108, 2147483648
  %v1154 = vor.u32 1.1754944e-38, %v1153
  %v1155 = vsel %vm1152, %v1154, %v1150
  %v1156 = vmul.f32 1.0, %v1155
  %v1157 = vrcp.pop %v1109
  %v1158 = vmul.f32 %v1109, %v1157
  %v1159 = vsub.f32 1.0, %v1158
  %v1160 = vmul.f32 %v1157, %v1159
  %v1161 = vadd.f32 %v1157, %v1160
  %vm1162 = vweird.f32 %v1109
  %vm1163 = vweird.f32 %v1157
  %vm1164 = vmor %vm1162, %vm1163
  %v1165 = vsel %vm1164, %v1157, %v1161
  %v1166 = vand.u32 2147483647, %v1109
  %vm1167 = vcmp.eq.f32.partialorder %v1166, 8.507059e+37
  %v1168 = vand.u32 %v1109, 2147483648
  %v1169 = vor.u32 1.1754944e-38, %v1168
  %v1170 = vsel %vm1167, %v1169, %v1165
  %v1171 = vmul.f32 1.0, %v1170
  %v1172 = vrcp.pop %v1110
  %v1173 = vmul.f32 %v1110, %v1172
  %v1174 = vsub.f32 1.0, %v1173
  %v1175 = vmul.f32 %v1172, %v1174
  %v1176 = vadd.f32 %v1172, %v1175
  %vm1177 = vweird.f32 %v1110
  %vm1178 = vweird.f32 %v1172
  %vm1179 = vmor %vm1177, %vm1178
  %v1180 = vsel %vm1179, %v1172, %v1176
  %v1181 = vand.u32 2147483647, %v1110
  %vm1182 = vcmp.eq.f32.partialorder %v1181, 8.507059e+37
  %v1183 = vand.u32 %v1110, 2147483648
  %v1184 = vor.u32 1.1754944e-38, %v1183
  %v1185 = vsel %vm1182, %v1184, %v1180
  %v1186 = vmul.f32 1.0, %v1185
  %v1187 = vrcp.pop %v1111
  %v1188 = vmul.f32 %v1111, %v1187
  %v1189 = vsub.f32 1.0, %v1188
  %v1190 = vmul.f32 %v1187, %v1189
  %v1191 = vadd.f32 %v1187, %v1190
  %vm1192 = vweird.f32 %v1111
  %vm1193 = vweird.f32 %v1187
  %vm1194 = vmor %vm1192, %vm1193
  %v1195 = vsel %vm1194, %v1187, %v1191
  %v1196 = vand.u32 2147483647, %v1111
  %vm1197 = vcmp.eq.f32.partialorder %v1196, 8.507059e+37
  %v1198 = vand.u32 %v1111, 2147483648
  %v1199 = vor.u32 1.1754944e-38, %v1198
  %v1200 = vsel %vm1197, %v1199, %v1195
  %v1201 = vmul.f32 1.0, %v1200
  %v1202 = vmul.f32 %v974, %v1026
  %v1203 = vmul.f32 %v975, %v1027
  %v1204 = vmul.f32 %v976, %v1028
  %v1205 = vadd.f32 %v1202, %v1203
  %v1206 = vadd.f32 %v1205, %v1204
  %1207 = vadd.xlane.f32.xlu0 %v1206
  %v1208 = vpop.xlane.xlu0 %1207
  %v1209 = vmul.f32 %v1208, 0.00390625
  %v1210 = vld [vmem:[%s2] sm:$0xf]
  %vm1211 = vcmask 64512
  %v1213 = vsel %vm1211, %v1210, 0
  %1215 = vmatpush.msra.mxu0 0.0
  %1216 = vmatpush.msra.mxu0 0.0
  %1217 = vmatpush.msra.mxu0 0.0
  %1218 = vmatpush.msra.mxu0 0.0
  %1219 = vmatpush.msra.mxu0 0.0
  %1220 = vmatpush.msra.mxu0 0.0
  %1221 = vmatpush.msra.mxu0 0.0
  %1222 = vmatpush.msra.mxu0 0.0
  %1223 = vmatpush.msra.mxu0 0.0
  %1224 = vmatpush.msra.mxu0 0.0
  %1225 = vmatpush.msra.mxu0 0.0
  %1226 = vmatpush.msra.mxu0 0.0
  %1227 = vmatpush.msra.mxu0 0.0
  %1228 = vmatpush.msra.mxu0 0.0
  %1229 = vmatpush.msra.mxu0 0.0
  %1230 = vmatpush.msra.mxu0 %v1209
  %1231 = vmatmul.f32.gmra.mxu0 %v1213
  %v1232 = vpop.f32.mrf.mxu0
  %v1233 = vadd.f32 %v530, %v1232
  %1234 = vdwg.mxu0
  %v1235 = vmax.f32 %v1233, 0.0
  %v1236 = vld [vmem:[%s3] sm:$0xff]
  %vm1237 = vcmask 31744
  %v1239 = vsel %vm1237, %v1236, 0
  %vm1241 = vcmask 1043456
  %v1243 = vsel %vm1241, %v1235, 0
  %1245 = vmatpush.msra.mxu0 0.0
  %1246 = vmatpush.msra.mxu0 0.0
  %1247 = vmatpush.msra.mxu0 0.0
  %1248 = vmatpush.msra.mxu0 0.0
  %1249 = vmatpush.msra.mxu0 0.0
  %1250 = vmatpush.msra.mxu0 0.0
  %1251 = vmatpush.msra.mxu0 0.0
  %1252 = vmatpush.msra.mxu0 0.0
  %1253 = vmatpush.msra.mxu0 0.0
  %1254 = vmatpush.msra.mxu0 0.0
  %1255 = vmatpush.msra.mxu0 0.0
  %1256 = vmatpush.msra.mxu0 0.0
  %1257 = vmatpush.msra.mxu0 0.0
  %1258 = vmatpush.msra.mxu0 0.0
  %1259 = vmatpush.msra.mxu0 0.0
  %1260 = vmatpush.msra.mxu0 %v1243
  %1261 = vmatmul.f32.gmra.mxu0 %v1239
  %v1262 = vpop.f32.mrf.mxu0
  %v1263 = vadd.f32 %v531, %v1262
  %1264 = vdwg.mxu0
  %v1265 = vxor.u32 %v1263, 2147483648
  %v1266 = vmul.f32 %v1265, 1.442695
  %v1267 = vpow.pop %v1266
  %v1268 = vadd.f32 %v1267, 1.0
  %v1269 = vrcp.pop %v1268
  %v1270 = vmul.f32 %v1268, %v1269
  %v1271 = vsub.f32 1.0, %v1270
  %v1272 = vmul.f32 %v1269, %v1271
  %v1273 = vadd.f32 %v1269, %v1272
  %vm1274 = vweird.f32 %v1268
  %vm1275 = vweird.f32 %v1269
  %vm1276 = vmor %vm1274, %vm1275
  %v1277 = vsel %vm1276, %v1269, %v1273
  %v1278 = vand.u32 2147483647, %v1268
  %vm1279 = vcmp.eq.f32.partialorder %v1278, 8.507059e+37
  %v1280 = vand.u32 %v1268, 2147483648
  %v1281 = vor.u32 1.1754944e-38, %v1280
  %v1282 = vsel %vm1279, %v1281, %v1277
  %v1283 = vmul.f32 1.0, %v1282
  %1285 = vset.pattern.permute.xlu0 0
  %1286 = vperm.xlu0 %1285, %v1283
  %v1287 = vpop.permute.xlu0 %1286
  %v1289 = vperm.slane %v1126, 0
  %v1290 = vperm.slane %v1141, 0
  %v1291 = vperm.slane %v1156, 0
  %v1292 = vmax.f32 %v1287, %v1289
  %v1293 = vmax.f32 %v1287, %v1290
  %v1294 = vmax.f32 %v1287, %v1291
  %v1295 = vmul.f32 %v974, %v1292
  %v1296 = vmul.f32 %v975, %v1293
  %v1297 = vmul.f32 %v976, %v1294
  %1298 = vst [vmem:[%s6] sm:$0xff] %v1295
  %1299 = vst [vmem:[%s6 + $0x8] sm:$0xff] %v1296
  %1300 = vst [vmem:[%s6 + $0x10] sm:$0xff] %v1297
  %v1301 = vmul.f32 %v977, %v1026
  %v1302 = vmul.f32 %v978, %v1027
  %v1303 = vmul.f32 %v979, %v1028
  %v1304 = vadd.f32 %v1301, %v1302
  %v1305 = vadd.f32 %v1304, %v1303
  %1306 = vadd.xlane.f32.xlu0 %v1305
  %v1307 = vpop.xlane.xlu0 %1306
  %v1308 = vmul.f32 %v1307, 0.00390625
  %v1309 = vld [vmem:[%s2] sm:$0xf]
  %v1311 = vsel %vm1211, %v1309, 0
  %1313 = vmatpush.msra.mxu0 0.0
  %1314 = vmatpush.msra.mxu0 0.0
  %1315 = vmatpush.msra.mxu0 0.0
  %1316 = vmatpush.msra.mxu0 0.0
  %1317 = vmatpush.msra.mxu0 0.0
  %1318 = vmatpush.msra.mxu0 0.0
  %1319 = vmatpush.msra.mxu0 0.0
  %1320 = vmatpush.msra.mxu0 0.0
  %1321 = vmatpush.msra.mxu0 0.0
  %1322 = vmatpush.msra.mxu0 0.0
  %1323 = vmatpush.msra.mxu0 0.0
  %1324 = vmatpush.msra.mxu0 0.0
  %1325 = vmatpush.msra.mxu0 0.0
  %1326 = vmatpush.msra.mxu0 0.0
  %1327 = vmatpush.msra.mxu0 0.0
  %1328 = vmatpush.msra.mxu0 %v1308
  %1329 = vmatmul.f32.gmra.mxu0 %v1311
  %v1330 = vpop.f32.mrf.mxu0
  %v1331 = vadd.f32 %v530, %v1330
  %1332 = vdwg.mxu0
  %v1333 = vmax.f32 %v1331, 0.0
  %v1334 = vld [vmem:[%s3] sm:$0xff]
  %v1336 = vsel %vm1237, %v1334, 0
  %v1339 = vsel %vm1241, %v1333, 0
  %1341 = vmatpush.msra.mxu0 0.0
  %1342 = vmatpush.msra.mxu0 0.0
  %1343 = vmatpush.msra.mxu0 0.0
  %1344 = vmatpush.msra.mxu0 0.0
  %1345 = vmatpush.msra.mxu0 0.0
  %1346 = vmatpush.msra.mxu0 0.0
  %1347 = vmatpush.msra.mxu0 0.0
  %1348 = vmatpush.msra.mxu0 0.0
  %1349 = vmatpush.msra.mxu0 0.0
  %1350 = vmatpush.msra.mxu0 0.0
  %1351 = vmatpush.msra.mxu0 0.0
  %1352 = vmatpush.msra.mxu0 0.0
  %1353 = vmatpush.msra.mxu0 0.0
  %1354 = vmatpush.msra.mxu0 0.0
  %1355 = vmatpush.msra.mxu0 0.0
  %1356 = vmatpush.msra.mxu0 %v1339
  %1357 = vmatmul.f32.gmra.mxu0 %v1336
  %v1358 = vpop.f32.mrf.mxu0
  %v1359 = vadd.f32 %v531, %v1358
  %1360 = vdwg.mxu0
  %v1361 = vxor.u32 %v1359, 2147483648
  %v1362 = vmul.f32 %v1361, 1.442695
  %v1363 = vpow.pop %v1362
  %v1364 = vadd.f32 %v1363, 1.0
  %v1365 = vrcp.pop %v1364
  %v1366 = vmul.f32 %v1364, %v1365
  %v1367 = vsub.f32 1.0, %v1366
  %v1368 = vmul.f32 %v1365, %v1367
  %v1369 = vadd.f32 %v1365, %v1368
  %vm1370 = vweird.f32 %v1364
  %vm1371 = vweird.f32 %v1365
  %vm1372 = vmor %vm1370, %vm1371
  %v1373 = vsel %vm1372, %v1365, %v1369
  %v1374 = vand.u32 2147483647, %v1364
  %vm1375 = vcmp.eq.f32.partialorder %v1374, 8.507059e+37
  %v1376 = vand.u32 %v1364, 2147483648
  %v1377 = vor.u32 1.1754944e-38, %v1376
  %v1378 = vsel %vm1375, %v1377, %v1373
  %v1379 = vmul.f32 1.0, %v1378
  %1381 = vset.pattern.permute.xlu0 0
  %1382 = vperm.xlu0 %1381, %v1379
  %v1383 = vpop.permute.xlu0 %1382
  %v1385 = vperm.slane %v1171, 0
  %v1386 = vperm.slane %v1186, 0
  %v1387 = vperm.slane %v1201, 0
  %v1388 = vmax.f32 %v1383, %v1385
  %v1389 = vmax.f32 %v1383, %v1386
  %v1390 = vmax.f32 %v1383, %v1387
  %v1391 = vmul.f32 %v977, %v1388
  %v1392 = vmul.f32 %v978, %v1389
  %v1393 = vmul.f32 %v979, %v1390
  %s1394 = scalar_lea.vmem %s6, 24
  %1395 = vst [vmem:[%s1394] sm:$0xff] %v1391
  %1396 = vst [vmem:[%s1394 + $0x8] sm:$0xff] %v1392
  %1397 = vst [vmem:[%s1394 + $0x10] sm:$0xff] %v1393
  // Predicated region
  $region26: #{attention_block_forward.1} parent=0 // pred_check
    _
  $region27: #{attention_block_forward.1} parent=0 // pred_check_branch
    %1399 = sbr.rel (0) target = $region29
  $region28: #{attention_block_forward.1} parent=0 // pred_region
    _
  $region29: #{attention_block_forward.1} parent=0 // pred_fallthru
    _
  // Predicated region
  $region30: #{attention_block_forward.1} parent=0 // pred_check
    _
  $region31: #{attention_block_forward.1} parent=0 // pred_check_branch
    %1401 = sbr.rel (0) target = $region33
  $region32: #{attention_block_forward.1} parent=0 // pred_region
    _
  $region33: #{attention_block_forward.1} parent=0 // pred_fallthru
    _

</llo_original>
